<compile_context>
chip_gen: v7x
topology: tpu7x:2x2x1
jax: 0.10.0
libtpu: 0.0.40
codegen_flags: <defaults>
</compile_context>

<pallas_src>
import functools
from math import sqrt

import jax
import jax.numpy as jnp
from jax import lax
from jax.experimental import pallas as pl
from jax.experimental.pallas import tpu as pltpu


# ----------------------------- fused Pallas kernel -----------------------------

def _fused_reprog_kernel(
    x_ref,      # (1, L, d_model)   target block for this batch element
    src_ref,    # (S, d_llm)        resident
    val_ref,    # (S, d_llm)        resident
    wq_ref, bq_ref,   # (H*E, d_model), (1, H*E)
    wk_ref, bk_ref,   # (H*E, d_llm),   (1, H*E)
    wv_ref, bv_ref,   # (H*E, d_llm),   (1, H*E)
    wo_ref, bo_ref,   # (d_llm, H*E),   (1, d_llm)
    o_ref,      # (1, L, d_llm)
    k_scr,      # VMEM (S, H*E) f32 — persists across grid steps
    v_scr,      # VMEM (S, H*E) f32
    *, n_heads, d_keys, scale,
):
    # --- K/V projections: compute once, reuse for every batch element --------
    @pl.when(pl.program_id(0) == 0)
    def _():
        k_scr[...] = lax.dot_general(
            src_ref[...], wk_ref[...], (((1,), (1,)), ((), ())),
            preferred_element_type=jnp.float32) + bk_ref[...]
        v_scr[...] = lax.dot_general(
            val_ref[...], wv_ref[...], (((1,), (1,)), ((), ())),
            preferred_element_type=jnp.float32) + bv_ref[...]

    # --- Q projection (scale folded in: L*H*E mults instead of L*S per head) -
    x = x_ref[0]                                    # (L, d_model)
    q = (lax.dot_general(
            x, wq_ref[...], (((1,), (1,)), ((), ())),
            preferred_element_type=jnp.float32) + bq_ref[...]) * scale  # (L, H*E)

    k = k_scr[...]                                  # (S, H*E) f32
    v = v_scr[...]                                  # (S, H*E) f32

    # --- per-head attention; repack lane-dense as (L, H*E) -------------------
    head_outs = []
    for h in range(n_heads):                        # static unrolled loop
        lo, hi = h * d_keys, (h + 1) * d_keys
        q_h = q[:, lo:hi]                           # (L, E)
        k_h = k[:, lo:hi]                           # (S, E)
        v_h = v[:, lo:hi]                           # (S, E)

        s = lax.dot_general(                        # (L, S) = q_h @ k_h.T
            q_h, k_h, (((1,), (1,)), ((), ())),
            preferred_element_type=jnp.float32)

        m = jnp.max(s, axis=-1, keepdims=True)
        p = jnp.exp(s - m)
        denom = jnp.sum(p, axis=-1, keepdims=True)
        a = p * pl.reciprocal(denom, approx=True)   # EUP slot, ~free

        head_outs.append(
            jnp.dot(a, v_h, preferred_element_type=jnp.float32))  # (L, E)

    attn = jnp.concatenate(head_outs, axis=-1)      # (L, H*E), lane-dense

    # --- output projection ----------------------------------------------------
    out = lax.dot_general(
        attn, wo_ref[...], (((1,), (1,)), ((), ())),
        preferred_element_type=jnp.float32) + bo_ref[...]          # (L, d_llm)
    o_ref[0] = out.astype(o_ref.dtype)


def fused_reprogramming_forward(target, source, value,
                                wq, bq, wk, bk, wv, bv, wo, bo,
                                n_heads, d_keys):
    B, L, d_model = target.shape
    S, d_llm = source.shape
    HE = n_heads * d_keys
    scale = 1.0 / sqrt(d_keys)

    kernel = functools.partial(
        _fused_reprog_kernel, n_heads=n_heads, d_keys=d_keys, scale=scale)

    const2d = lambda b: (0, 0)   # resident blocks (weights, source, value)

    return pl.pallas_call(
        kernel,
        out_shape=jax.ShapeDtypeStruct((B, L, d_llm), target.dtype),
        grid=(B,),
        in_specs=[
            pl.BlockSpec((1, L, d_model), lambda b: (b, 0, 0)),   # target
            pl.BlockSpec((S, d_llm), const2d),                    # source
            pl.BlockSpec((S, d_llm), const2d),                    # value
            pl.BlockSpec((HE, d_model), const2d),                 # wq
            pl.BlockSpec((1, HE), const2d),                       # bq
            pl.BlockSpec((HE, d_llm), const2d),                   # wk
            pl.BlockSpec((1, HE), const2d),                       # bk
            pl.BlockSpec((HE, d_llm), const2d),                   # wv
            pl.BlockSpec((1, HE), const2d),                       # bv
            pl.BlockSpec((d_llm, HE), const2d),                   # wo
            pl.BlockSpec((1, d_llm), const2d),                    # bo
        ],
        out_specs=pl.BlockSpec((1, L, d_llm), lambda b: (b, 0, 0)),
        scratch_shapes=[
            pltpu.VMEM((S, HE), jnp.float32),   # projected K (persists over b)
            pltpu.VMEM((S, HE), jnp.float32),   # projected V (persists over b)
        ],
        compiler_params=pltpu.CompilerParams(
            # "arbitrary": scratch K/V carried sequentially across the batch axis.
            dimension_semantics=("arbitrary",),
            vmem_limit_bytes=32 * 1024 * 1024,
        ),
    )(target, source, value,
      wq, bq.reshape(1, HE), wk, bk.reshape(1, HE),
      wv, bv.reshape(1, HE), wo, bo.reshape(1, d_llm))


# ----------------------------- Module wrapper -----------------------------

def _torch_linear_init(key, out_features, in_features, dtype=jnp.float32):
    """Deterministic PyTorch-style uniform(-1/sqrt(fan_in), 1/sqrt(fan_in)) init."""
    kw, kb = jax.random.split(key)
    bound = 1.0 / sqrt(in_features)
    w = jax.random.uniform(kw, (out_features, in_features), dtype, -bound, bound)
    b = jax.random.uniform(kb, (out_features,), dtype, -bound, bound)
    return w, b


class ReprogrammingLayerPallas:
    def __init__(self, d_model, n_heads, d_keys=None, d_llm=None, key=None):
        d_keys = d_keys or d_model // n_heads
        self.n_heads = n_heads
        self.d_keys = d_keys
        self.d_llm = d_llm

        keys = jax.random.split(key, 4)
        self.wq, self.bq = _torch_linear_init(keys[0], d_keys * n_heads, d_model)
        self.wk, self.bk = _torch_linear_init(keys[1], d_keys * n_heads, d_llm)
        self.wv, self.bv = _torch_linear_init(keys[2], d_keys * n_heads, d_llm)
        self.wo, self.bo = _torch_linear_init(keys[3], d_llm, d_keys * n_heads)

    def __call__(self, target_embedding, source_embedding, value_embedding):
        return fused_reprogramming_forward(
            target_embedding, source_embedding, value_embedding,
            self.wq, self.bq, self.wk, self.bk,
            self.wv, self.bv, self.wo, self.bo,
            self.n_heads, self.d_keys)


# ------------------------------ pure-JAX ref ------------------------------

def reference_forward(layer, target_embedding, source_embedding, value_embedding):
    B, L, _ = target_embedding.shape
    S, _ = source_embedding.shape
    H, E = layer.n_heads, layer.d_keys

    q = (target_embedding @ layer.wq.T + layer.bq).reshape(B, L, H, E)
    k = (source_embedding @ layer.wk.T + layer.bk).reshape(S, H, E)
    v = (value_embedding @ layer.wv.T + layer.bv).reshape(S, H, E)

    scale = 1.0 / sqrt(E)
    scores = jnp.einsum("blhe,she->bhls", q, k)
    A = jax.nn.softmax(scale * scores, axis=-1)
    out = jnp.einsum("bhls,she->blhe", A, v).reshape(B, L, H * E)
    return out @ layer.wo.T + layer.bo


# ---------------------------------- main ----------------------------------

if __name__ == "__main__":
    d_model, n_heads, d_llm = 32, 4, 48
    B, L, S = 2, 8, 16

    root = jax.random.PRNGKey(0)
    k_params, k_t, k_s, k_v = jax.random.split(root, 4)

    layer = ReprogrammingLayerPallas(d_model, n_heads, d_llm=d_llm, key=k_params)

    target = jax.random.normal(k_t, (B, L, d_model), jnp.float32)
    source = jax.random.normal(k_s, (S, d_llm), jnp.float32)
    value = jax.random.normal(k_v, (S, d_llm), jnp.float32)

    out = layer(target, source, value)
    out = jax.block_until_ready(out)

    ref = reference_forward(layer, target, source, value)
    assert out.shape == (B, L, d_llm), out.shape
    # Tolerance loosened from 1e-4: the softmax denominator uses the EUP
    # approximate reciprocal (pl.reciprocal(approx=True)), which introduces a
    # small relative error in the attention weights.
    assert jnp.allclose(out, ref, atol=1e-2, rtol=1e-2), "mismatch vs reference"

    print("KERNEL_OK")
</pallas_src>

<mosaic_0001>
module attributes {stable_mosaic.version = 11 : i64} {
  func.func @_fused_reprog_kernel(%arg0: i32, %arg1: memref<1x8x32xf32, #tpu.memory_space<vmem>>, %arg2: memref<16x48xf32, #tpu.memory_space<vmem>>, %arg3: memref<16x48xf32, #tpu.memory_space<vmem>>, %arg4: memref<32x32xf32, #tpu.memory_space<vmem>>, %arg5: memref<1x32xf32, #tpu.memory_space<vmem>>, %arg6: memref<32x48xf32, #tpu.memory_space<vmem>>, %arg7: memref<1x32xf32, #tpu.memory_space<vmem>>, %arg8: memref<32x48xf32, #tpu.memory_space<vmem>>, %arg9: memref<1x32xf32, #tpu.memory_space<vmem>>, %arg10: memref<48x32xf32, #tpu.memory_space<vmem>>, %arg11: memref<1x48xf32, #tpu.memory_space<vmem>>, %arg12: memref<1x8x48xf32, #tpu.memory_space<vmem>>, %arg13: memref<16x32xf32, #tpu.memory_space<vmem>>, %arg14: memref<16x32xf32, #tpu.memory_space<vmem>>) attributes {dimension_semantics = [#tpu.dimension_semantics<arbitrary>], iteration_bounds = array<i64: 2>, scalar_prefetch = 0 : i64, scratch_operands = 2 : i64, tpu.core_type = #tpu.core_type<tc>, window_params = [{transform_indices = @transform_0, window_bounds = array<i64: 1, 8, 32>}, {pipeline_mode = #tpu.pipeline_mode<synchronous>, transform_indices = @transform_1, window_bounds = array<i64: 16, 48>}, {pipeline_mode = #tpu.pipeline_mode<synchronous>, transform_indices = @transform_2, window_bounds = array<i64: 16, 48>}, {pipeline_mode = #tpu.pipeline_mode<synchronous>, transform_indices = @transform_3, window_bounds = array<i64: 32, 32>}, {pipeline_mode = #tpu.pipeline_mode<synchronous>, transform_indices = @transform_4, window_bounds = array<i64: 1, 32>}, {pipeline_mode = #tpu.pipeline_mode<synchronous>, transform_indices = @transform_5, window_bounds = array<i64: 32, 48>}, {pipeline_mode = #tpu.pipeline_mode<synchronous>, transform_indices = @transform_6, window_bounds = array<i64: 1, 32>}, {pipeline_mode = #tpu.pipeline_mode<synchronous>, transform_indices = @transform_7, window_bounds = array<i64: 32, 48>}, {pipeline_mode = #tpu.pipeline_mode<synchronous>, transform_indices = @transform_8, window_bounds = array<i64: 1, 32>}, {pipeline_mode = #tpu.pipeline_mode<synchronous>, transform_indices = @transform_9, window_bounds = array<i64: 48, 32>}, {pipeline_mode = #tpu.pipeline_mode<synchronous>, transform_indices = @transform_10, window_bounds = array<i64: 1, 48>}, {transform_indices = @transform_11, window_bounds = array<i64: 1, 8, 48>}]} {
    %c0_i32 = arith.constant 0 : i32
    %0 = arith.cmpi eq, %arg0, %c0_i32 : i32
    %1 = arith.extui %0 : i1 to i32
    %c0_i32_0 = arith.constant 0 : i32
    %2 = arith.cmpi ne, %1, %c0_i32_0 : i32
    scf.if %2 {
      %c0_36 = arith.constant 0 : index
      %c0_37 = arith.constant 0 : index
      %83 = vector.load %arg2[%c0_36, %c0_37] : memref<16x48xf32, #tpu.memory_space<vmem>>, vector<16x48xf32>
      %c0_38 = arith.constant 0 : index
      %c0_39 = arith.constant 0 : index
      %84 = vector.load %arg6[%c0_38, %c0_39] : memref<32x48xf32, #tpu.memory_space<vmem>>, vector<32x48xf32>
      %cst_40 = arith.constant dense<0.000000e+00> : vector<16x32xf32>
      %85 = tpu.matmul %83, %84, %cst_40 {dimension_numbers = #tpu.dot_dimension_numbers<[1], [1], [0], [0], [0, 0, 1, 0], [], []>} : vector<16x48xf32>, vector<32x48xf32>, vector<16x32xf32> -> vector<16x32xf32>
      %c0_41 = arith.constant 0 : index
      %c0_42 = arith.constant 0 : index
      %86 = vector.load %arg7[%c0_41, %c0_42] : memref<1x32xf32, #tpu.memory_space<vmem>>, vector<1x32xf32>
      %87 = vector.broadcast %86 : vector<1x32xf32> to vector<16x32xf32>
      %88 = arith.addf %85, %87 : vector<16x32xf32>
      %c0_43 = arith.constant 0 : index
      %c0_44 = arith.constant 0 : index
      %89 = vector.load %arg13[%c0_43, %c0_44] : memref<16x32xf32, #tpu.memory_space<vmem>>, vector<16x32xf32>
      tpu.vector_store %arg13[%c0_43, %c0_44], %88 {strides = array<i32>} : memref<16x32xf32, #tpu.memory_space<vmem>>, vector<16x32xf32>,
      %c0_45 = arith.constant 0 : index
      %c0_46 = arith.constant 0 : index
      %90 = vector.load %arg3[%c0_45, %c0_46] : memref<16x48xf32, #tpu.memory_space<vmem>>, vector<16x48xf32>
      %c0_47 = arith.constant 0 : index
      %c0_48 = arith.constant 0 : index
      %91 = vector.load %arg8[%c0_47, %c0_48] : memref<32x48xf32, #tpu.memory_space<vmem>>, vector<32x48xf32>
      %cst_49 = arith.constant dense<0.000000e+00> : vector<16x32xf32>
      %92 = tpu.matmul %90, %91, %cst_49 {dimension_numbers = #tpu.dot_dimension_numbers<[1], [1], [0], [0], [0, 0, 1, 0], [], []>} : vector<16x48xf32>, vector<32x48xf32>, vector<16x32xf32> -> vector<16x32xf32>
      %c0_50 = arith.constant 0 : index
      %c0_51 = arith.constant 0 : index
      %93 = vector.load %arg9[%c0_50, %c0_51] : memref<1x32xf32, #tpu.memory_space<vmem>>, vector<1x32xf32>
      %94 = vector.broadcast %93 : vector<1x32xf32> to vector<16x32xf32>
      %95 = arith.addf %92, %94 : vector<16x32xf32>
      %c0_52 = arith.constant 0 : index
      %c0_53 = arith.constant 0 : index
      %96 = vector.load %arg14[%c0_52, %c0_53] : memref<16x32xf32, #tpu.memory_space<vmem>>, vector<16x32xf32>
      tpu.vector_store %arg14[%c0_52, %c0_53], %95 {strides = array<i32>} : memref<16x32xf32, #tpu.memory_space<vmem>>, vector<16x32xf32>,
    } else {
    }
    %c0 = arith.constant 0 : index
    %c0_1 = arith.constant 0 : index
    %c0_2 = arith.constant 0 : index
    %3 = vector.load %arg1[%c0, %c0_1, %c0_2] : memref<1x8x32xf32, #tpu.memory_space<vmem>>, vector<1x8x32xf32>
    %4 = vector.shape_cast %3 : vector<1x8x32xf32> to vector<8x32xf32>
    %c0_3 = arith.constant 0 : index
    %c0_4 = arith.constant 0 : index
    %5 = vector.load %arg4[%c0_3, %c0_4] : memref<32x32xf32, #tpu.memory_space<vmem>>, vector<32x32xf32>
    %cst = arith.constant dense<0.000000e+00> : vector<8x32xf32>
    %6 = tpu.matmul %4, %5, %cst {dimension_numbers = #tpu.dot_dimension_numbers<[1], [1], [0], [0], [0, 0, 1, 0], [], []>} : vector<8x32xf32>, vector<32x32xf32>, vector<8x32xf32> -> vector<8x32xf32>
    %c0_5 = arith.constant 0 : index
    %c0_6 = arith.constant 0 : index
    %7 = vector.load %arg5[%c0_5, %c0_6] : memref<1x32xf32, #tpu.memory_space<vmem>>, vector<1x32xf32>
    %8 = vector.broadcast %7 : vector<1x32xf32> to vector<8x32xf32>
    %9 = arith.addf %6, %8 : vector<8x32xf32>
    %cst_7 = arith.constant 0.353553385 : f32
    %10 = vector.broadcast %cst_7 : f32 to vector<8x32xf32>
    %11 = arith.mulf %9, %10 : vector<8x32xf32>
    %c0_8 = arith.constant 0 : index
    %c0_9 = arith.constant 0 : index
    %12 = vector.load %arg13[%c0_8, %c0_9] : memref<16x32xf32, #tpu.memory_space<vmem>>, vector<16x32xf32>
    %c0_10 = arith.constant 0 : index
    %c0_11 = arith.constant 0 : index
    %13 = vector.load %arg14[%c0_10, %c0_11] : memref<16x32xf32, #tpu.memory_space<vmem>>, vector<16x32xf32>
    %14 = vector.extract_strided_slice %11 {offsets = [0, 0], sizes = [8, 8], strides = [1, 1]} : vector<8x32xf32> to vector<8x8xf32>
    %15 = vector.extract_strided_slice %12 {offsets = [0, 0], sizes = [16, 8], strides = [1, 1]} : vector<16x32xf32> to vector<16x8xf32>
    %16 = vector.extract_strided_slice %13 {offsets = [0, 0], sizes = [16, 8], strides = [1, 1]} : vector<16x32xf32> to vector<16x8xf32>
    %cst_12 = arith.constant dense<0.000000e+00> : vector<8x16xf32>
    %17 = tpu.matmul %14, %15, %cst_12 {dimension_numbers = #tpu.dot_dimension_numbers<[1], [1], [0], [0], [0, 0, 1, 0], [], []>} : vector<8x8xf32>, vector<16x8xf32>, vector<8x16xf32> -> vector<8x16xf32>
    %cst_13 = arith.constant dense<0xFF800000> : vector<8xf32>
    %18 = vector.multi_reduction <maximumf>, %17, %cst_13 [1] : vector<8x16xf32> to vector<8xf32>
    %19 = vector.shape_cast %18 : vector<8xf32> to vector<8x1xf32>
    %20 = vector.broadcast %19 : vector<8x1xf32> to vector<8x16xf32>
    %21 = arith.subf %17, %20 : vector<8x16xf32>
    %22 = math.exp %21 : vector<8x16xf32>
    %cst_14 = arith.constant dense<0.000000e+00> : vector<8xf32>
    %23 = vector.multi_reduction <add>, %22, %cst_14 [1] : vector<8x16xf32> to vector<8xf32>
    %24 = vector.shape_cast %23 : vector<8xf32> to vector<8x1xf32>
    %25 = tpu.reciprocal %24 {approx = true} : vector<8x1xf32> -> vector<8x1xf32>
    %26 = vector.broadcast %25 : vector<8x1xf32> to vector<8x16xf32>
    %27 = arith.mulf %22, %26 : vector<8x16xf32>
    %cst_15 = arith.constant dense<0.000000e+00> : vector<8x8xf32>
    %28 = tpu.matmul %27, %16, %cst_15 {dimension_numbers = #tpu.dot_dimension_numbers<[1], [0], [0], [1], [0, 0, 1, 1], [], []>} : vector<8x16xf32>, vector<16x8xf32>, vector<8x8xf32> -> vector<8x8xf32>
    %29 = vector.extract_strided_slice %11 {offsets = [0, 8], sizes = [8, 8], strides = [1, 1]} : vector<8x32xf32> to vector<8x8xf32>
    %30 = vector.extract_strided_slice %12 {offsets = [0, 8], sizes = [16, 8], strides = [1, 1]} : vector<16x32xf32> to vector<16x8xf32>
    %31 = vector.extract_strided_slice %13 {offsets = [0, 8], sizes = [16, 8], strides = [1, 1]} : vector<16x32xf32> to vector<16x8xf32>
    %cst_16 = arith.constant dense<0.000000e+00> : vector<8x16xf32>
    %32 = tpu.matmul %29, %30, %cst_16 {dimension_numbers = #tpu.dot_dimension_numbers<[1], [1], [0], [0], [0, 0, 1, 0], [], []>} : vector<8x8xf32>, vector<16x8xf32>, vector<8x16xf32> -> vector<8x16xf32>
    %cst_17 = arith.constant dense<0xFF800000> : vector<8xf32>
    %33 = vector.multi_reduction <maximumf>, %32, %cst_17 [1] : vector<8x16xf32> to vector<8xf32>
    %34 = vector.shape_cast %33 : vector<8xf32> to vector<8x1xf32>
    %35 = vector.broadcast %34 : vector<8x1xf32> to vector<8x16xf32>
    %36 = arith.subf %32, %35 : vector<8x16xf32>
    %37 = math.exp %36 : vector<8x16xf32>
    %cst_18 = arith.constant dense<0.000000e+00> : vector<8xf32>
    %38 = vector.multi_reduction <add>, %37, %cst_18 [1] : vector<8x16xf32> to vector<8xf32>
    %39 = vector.shape_cast %38 : vector<8xf32> to vector<8x1xf32>
    %40 = tpu.reciprocal %39 {approx = true} : vector<8x1xf32> -> vector<8x1xf32>
    %41 = vector.broadcast %40 : vector<8x1xf32> to vector<8x16xf32>
    %42 = arith.mulf %37, %41 : vector<8x16xf32>
    %cst_19 = arith.constant dense<0.000000e+00> : vector<8x8xf32>
    %43 = tpu.matmul %42, %31, %cst_19 {dimension_numbers = #tpu.dot_dimension_numbers<[1], [0], [0], [1], [0, 0, 1, 1], [], []>} : vector<8x16xf32>, vector<16x8xf32>, vector<8x8xf32> -> vector<8x8xf32>
    %44 = vector.extract_strided_slice %11 {offsets = [0, 16], sizes = [8, 8], strides = [1, 1]} : vector<8x32xf32> to vector<8x8xf32>
    %45 = vector.extract_strided_slice %12 {offsets = [0, 16], sizes = [16, 8], strides = [1, 1]} : vector<16x32xf32> to vector<16x8xf32>
    %46 = vector.extract_strided_slice %13 {offsets = [0, 16], sizes = [16, 8], strides = [1, 1]} : vector<16x32xf32> to vector<16x8xf32>
    %cst_20 = arith.constant dense<0.000000e+00> : vector<8x16xf32>
    %47 = tpu.matmul %44, %45, %cst_20 {dimension_numbers = #tpu.dot_dimension_numbers<[1], [1], [0], [0], [0, 0, 1, 0], [], []>} : vector<8x8xf32>, vector<16x8xf32>, vector<8x16xf32> -> vector<8x16xf32>
    %cst_21 = arith.constant dense<0xFF800000> : vector<8xf32>
    %48 = vector.multi_reduction <maximumf>, %47, %cst_21 [1] : vector<8x16xf32> to vector<8xf32>
    %49 = vector.shape_cast %48 : vector<8xf32> to vector<8x1xf32>
    %50 = vector.broadcast %49 : vector<8x1xf32> to vector<8x16xf32>
    %51 = arith.subf %47, %50 : vector<8x16xf32>
    %52 = math.exp %51 : vector<8x16xf32>
    %cst_22 = arith.constant dense<0.000000e+00> : vector<8xf32>
    %53 = vector.multi_reduction <add>, %52, %cst_22 [1] : vector<8x16xf32> to vector<8xf32>
    %54 = vector.shape_cast %53 : vector<8xf32> to vector<8x1xf32>
    %55 = tpu.reciprocal %54 {approx = true} : vector<8x1xf32> -> vector<8x1xf32>
    %56 = vector.broadcast %55 : vector<8x1xf32> to vector<8x16xf32>
    %57 = arith.mulf %52, %56 : vector<8x16xf32>
    %cst_23 = arith.constant dense<0.000000e+00> : vector<8x8xf32>
    %58 = tpu.matmul %57, %46, %cst_23 {dimension_numbers = #tpu.dot_dimension_numbers<[1], [0], [0], [1], [0, 0, 1, 1], [], []>} : vector<8x16xf32>, vector<16x8xf32>, vector<8x8xf32> -> vector<8x8xf32>
    %59 = vector.extract_strided_slice %11 {offsets = [0, 24], sizes = [8, 8], strides = [1, 1]} : vector<8x32xf32> to vector<8x8xf32>
    %60 = vector.extract_strided_slice %12 {offsets = [0, 24], sizes = [16, 8], strides = [1, 1]} : vector<16x32xf32> to vector<16x8xf32>
    %61 = vector.extract_strided_slice %13 {offsets = [0, 24], sizes = [16, 8], strides = [1, 1]} : vector<16x32xf32> to vector<16x8xf32>
    %cst_24 = arith.constant dense<0.000000e+00> : vector<8x16xf32>
    %62 = tpu.matmul %59, %60, %cst_24 {dimension_numbers = #tpu.dot_dimension_numbers<[1], [1], [0], [0], [0, 0, 1, 0], [], []>} : vector<8x8xf32>, vector<16x8xf32>, vector<8x16xf32> -> vector<8x16xf32>
    %cst_25 = arith.constant dense<0xFF800000> : vector<8xf32>
    %63 = vector.multi_reduction <maximumf>, %62, %cst_25 [1] : vector<8x16xf32> to vector<8xf32>
    %64 = vector.shape_cast %63 : vector<8xf32> to vector<8x1xf32>
    %65 = vector.broadcast %64 : vector<8x1xf32> to vector<8x16xf32>
    %66 = arith.subf %62, %65 : vector<8x16xf32>
    %67 = math.exp %66 : vector<8x16xf32>
    %cst_26 = arith.constant dense<0.000000e+00> : vector<8xf32>
    %68 = vector.multi_reduction <add>, %67, %cst_26 [1] : vector<8x16xf32> to vector<8xf32>
    %69 = vector.shape_cast %68 : vector<8xf32> to vector<8x1xf32>
    %70 = tpu.reciprocal %69 {approx = true} : vector<8x1xf32> -> vector<8x1xf32>
    %71 = vector.broadcast %70 : vector<8x1xf32> to vector<8x16xf32>
    %72 = arith.mulf %67, %71 : vector<8x16xf32>
    %cst_27 = arith.constant dense<0.000000e+00> : vector<8x8xf32>
    %73 = tpu.matmul %72, %61, %cst_27 {dimension_numbers = #tpu.dot_dimension_numbers<[1], [0], [0], [1], [0, 0, 1, 1], [], []>} : vector<8x16xf32>, vector<16x8xf32>, vector<8x8xf32> -> vector<8x8xf32>
    %74 = tpu.concatenate %28, %43, %58, %73 in 1 : vector<8x8xf32>, vector<8x8xf32>, vector<8x8xf32>, vector<8x8xf32> -> vector<8x32xf32>
    %c0_28 = arith.constant 0 : index
    %c0_29 = arith.constant 0 : index
    %75 = vector.load %arg10[%c0_28, %c0_29] : memref<48x32xf32, #tpu.memory_space<vmem>>, vector<48x32xf32>
    %cst_30 = arith.constant dense<0.000000e+00> : vector<8x48xf32>
    %76 = tpu.matmul %74, %75, %cst_30 {dimension_numbers = #tpu.dot_dimension_numbers<[1], [1], [0], [0], [0, 0, 1, 0], [], []>} : vector<8x32xf32>, vector<48x32xf32>, vector<8x48xf32> -> vector<8x48xf32>
    %c0_31 = arith.constant 0 : index
    %c0_32 = arith.constant 0 : index
    %77 = vector.load %arg11[%c0_31, %c0_32] : memref<1x48xf32, #tpu.memory_space<vmem>>, vector<1x48xf32>
    %78 = vector.broadcast %77 : vector<1x48xf32> to vector<8x48xf32>
    %79 = arith.addf %76, %78 : vector<8x48xf32>
    %c0_33 = arith.constant 0 : index
    %c0_34 = arith.constant 0 : index
    %c0_35 = arith.constant 0 : index
    %80 = vector.load %arg12[%c0_33, %c0_34, %c0_35] : memref<1x8x48xf32, #tpu.memory_space<vmem>>, vector<1x8x48xf32>
    %81 = vector.shape_cast %80 : vector<1x8x48xf32> to vector<8x48xf32>
    %82 = vector.shape_cast %79 : vector<8x48xf32> to vector<1x8x48xf32>
    tpu.vector_store %arg12[%c0_33, %c0_34, %c0_35], %82 {strides = array<i32>} : memref<1x8x48xf32, #tpu.memory_space<vmem>>, vector<1x8x48xf32>,
    return
  }
  func.func @transform_0(%arg0: i32) -> (i32, i32, i32) {
    %c0_i32 = arith.constant 0 : i32
    %c0_i32_0 = arith.constant 0 : i32
    %c0_i32_1 = arith.constant 0 : i32
    return %arg0, %c0_i32, %c0_i32_0 : i32, i32, i32
  }
  func.func @transform_1(%arg0: i32) -> (i32, i32) {
    %c0_i32 = arith.constant 0 : i32
    %c0_i32_0 = arith.constant 0 : i32
    %c0_i32_1 = arith.constant 0 : i32
    return %c0_i32, %c0_i32_0 : i32, i32
  }
  func.func @transform_2(%arg0: i32) -> (i32, i32) {
    %c0_i32 = arith.constant 0 : i32
    %c0_i32_0 = arith.constant 0 : i32
    %c0_i32_1 = arith.constant 0 : i32
    return %c0_i32, %c0_i32_0 : i32, i32
  }
  func.func @transform_3(%arg0: i32) -> (i32, i32) {
    %c0_i32 = arith.constant 0 : i32
    %c0_i32_0 = arith.constant 0 : i32
    %c0_i32_1 = arith.constant 0 : i32
    return %c0_i32, %c0_i32_0 : i32, i32
  }
  func.func @transform_4(%arg0: i32) -> (i32, i32) {
    %c0_i32 = arith.constant 0 : i32
    %c0_i32_0 = arith.constant 0 : i32
    %c0_i32_1 = arith.constant 0 : i32
    return %c0_i32, %c0_i32_0 : i32, i32
  }
  func.func @transform_5(%arg0: i32) -> (i32, i32) {
    %c0_i32 = arith.constant 0 : i32
    %c0_i32_0 = arith.constant 0 : i32
    %c0_i32_1 = arith.constant 0 : i32
    return %c0_i32, %c0_i32_0 : i32, i32
  }
  func.func @transform_6(%arg0: i32) -> (i32, i32) {
    %c0_i32 = arith.constant 0 : i32
    %c0_i32_0 = arith.constant 0 : i32
    %c0_i32_1 = arith.constant 0 : i32
    return %c0_i32, %c0_i32_0 : i32, i32
  }
  func.func @transform_7(%arg0: i32) -> (i32, i32) {
    %c0_i32 = arith.constant 0 : i32
    %c0_i32_0 = arith.constant 0 : i32
    %c0_i32_1 = arith.constant 0 : i32
    return %c0_i32, %c0_i32_0 : i32, i32
  }
  func.func @transform_8(%arg0: i32) -> (i32, i32) {
    %c0_i32 = arith.constant 0 : i32
    %c0_i32_0 = arith.constant 0 : i32
    %c0_i32_1 = arith.constant 0 : i32
    return %c0_i32, %c0_i32_0 : i32, i32
  }
  func.func @transform_9(%arg0: i32) -> (i32, i32) {
    %c0_i32 = arith.constant 0 : i32
    %c0_i32_0 = arith.constant 0 : i32
    %c0_i32_1 = arith.constant 0 : i32
    return %c0_i32, %c0_i32_0 : i32, i32
  }
  func.func @transform_10(%arg0: i32) -> (i32, i32) {
    %c0_i32 = arith.constant 0 : i32
    %c0_i32_0 = arith.constant 0 : i32
    %c0_i32_1 = arith.constant 0 : i32
    return %c0_i32, %c0_i32_0 : i32, i32
  }
  func.func @transform_11(%arg0: i32) -> (i32, i32, i32) {
    %c0_i32 = arith.constant 0 : i32
    %c0_i32_0 = arith.constant 0 : i32
    %c0_i32_1 = arith.constant 0 : i32
    return %arg0, %c0_i32, %c0_i32_0 : i32, i32, i32
  }
}

</mosaic_0001>

<llo_original>
// kernel: tpu_custom_call.1
$region0: #{tpu_custom_call.1}
  #allocation0 [shape = 'u32[]', space=smem, size = 0x4, offset = 0x4, fixed_abs, tag = 'smem constant byte address 0x4 - core index']
  #allocation1 [shape = 'u32[144,128]{1,0:T(1,128)}', space=vmem, size = 0x12000, scoped, tag = 'internal scratch']
  #allocation2 [shape = 'f32[16,32]{1,0:T(8,128)}', space=vmem, size = 0x2000, scoped, tag = 'scratch operand']
  #allocation3 [shape = 'f32[16,32]{1,0:T(8,128)}', space=vmem, size = 0x2000, scoped, tag = 'scratch operand']
  %s0 = inlined_call_operand.vmem [shape: f32[2,8,32], index: 0, kind: input, shape index: {}]
  %s1 = inlined_call_operand.hbm [shape: f32[16,48], index: 1, kind: input, shape index: {}]
  %s2 = inlined_call_operand.hbm [shape: f32[16,48], index: 2, kind: input, shape index: {}]
  %s3 = inlined_call_operand.vmem [shape: f32[32,32], index: 3, kind: input, shape index: {}]
  %s4 = inlined_call_operand.vmem [shape: f32[1,32], index: 4, kind: input, shape index: {}]
  %s5 = inlined_call_operand.vmem [shape: f32[32,48], index: 5, kind: input, shape index: {}]
  %s6 = inlined_call_operand.vmem [shape: f32[1,32], index: 6, kind: input, shape index: {}]
  %s7 = inlined_call_operand.hbm [shape: f32[32,48], index: 7, kind: input, shape index: {}]
  %s8 = inlined_call_operand.hbm [shape: f32[1,32], index: 8, kind: input, shape index: {}]
  %s9 = inlined_call_operand.vmem [shape: f32[48,32], index: 9, kind: input, shape index: {}]
  %s10 = inlined_call_operand.vmem [shape: f32[1,48], index: 10, kind: input, shape index: {}]
  %s11 = inlined_call_operand.hbm [shape: f32[2,8,48], index: 11, kind: output, shape index: {}]
  %s12 = sld [smem:[#allocation0]]
  $region97: #{tpu_custom_call.1} parent=0
    _
  %s14 = ssub.s32 1, %s12
  %s15 = scalar_select 0, %s14, %s12
  $region1: #{tpu_custom_call.1} parent=0
    #allocation4 [shape = 'u8[8192]{0}', space=vmem, size = 0x2000, scoped, tag = 'input window, operand 1, single buffered']
    #allocation5 [shape = 's32[2]{0}', space=sflag, size = 0x8, scoped, tag = 'scoped memory for tpu_custom_call.1']
    #allocation6 [shape = 's32[2]{0}', space=sflag, size = 0x8, scoped, tag = 'scoped memory for tpu_custom_call.1']
    #allocation7 [shape = 'u8[8192]{0}', space=vmem, size = 0x2000, scoped, tag = 'input window, operand 2, single buffered']
    #allocation8 [shape = 's32[1]{0}', space=sflag, size = 0x4, scoped, tag = 'scoped memory for tpu_custom_call.1']
    #allocation9 [shape = 'u8[16384]{0}', space=vmem, size = 0x4000, scoped, tag = 'input window, operand 7, single buffered']
    #allocation10 [shape = 'u8[512]{0}', space=vmem, size = 0x400, scoped, tag = 'input window, operand 8, single buffered']
    #allocation11 [shape = 's32[1]{0}', space=sflag, size = 0x4, scoped, tag = 'scoped memory for tpu_custom_call.1']
    #allocation12 [shape = 'u8[8192]{0}', space=vmem, size = 0x2000, scoped, tag = 'output window, operand 0']
    %16 = vsyncpa [#allocation5], 0
    %17 = vsyncpa [#allocation8], 0
    %18 = vsyncpa [#allocation11], 0
    %19 = vsyncpa [#allocation6], 0
    %s20 = scalar_lea.sflag [#allocation6], 1
    %21 = vsyncpa %s20, 0
    loop: start=0, step=1, limit=4
    $region2: #{tpu_custom_call.1} parent=1 // loop_pre_header
      _
    $region3: #{tpu_custom_call.1} parent=1 // loop_header
      %s23 = sphi 0, %s27
      %p24 = scmp.ge.s32.totalorder %s23, 4
      %s33 = sphi 0, %s35
      %s36 = sphi 0, %s33
      %s37 = sphi 0, %s36
      %s53 = sphi 0, %s37
      %s57 = sphi 0, %s57
      %s59 = sphi 0, %s57
      %s60 = sphi 0, %s59
      %s74 = sphi 0, %s60
      %s78 = sphi 0, %s78
      %s80 = sphi 0, %s78
      %s81 = sphi 0, %s80
      %s95 = sphi 0, %s81
      %s99 = sphi 0, %s99
      %s101 = sphi 0, %s99
      %s102 = sphi 0, %s101
      %s116 = sphi 0, %s102
      %s120 = sphi 0, %s120
      %s122 = sphi 0, %s120
      %s123 = sphi 0, %s122
      %s137 = sphi 0, %s123
      %s141 = sphi 0, %s141
      %s143 = sphi 0, %s141
      %s144 = sphi 0, %s143
      %s158 = sphi 0, %s144
      %s162 = sphi 0, %s162
      %s164 = sphi 0, %s162
      %s165 = sphi 0, %s164
      %s179 = sphi 0, %s165
      %s183 = sphi 0, %s183
      %s185 = sphi 0, %s183
      %s186 = sphi 0, %s185
      %s200 = sphi 0, %s186
      %s204 = sphi 0, %s204
      %s206 = sphi 0, %s204
      %s207 = sphi 0, %s206
      %s221 = sphi 0, %s207
      %s225 = sphi 0, %s225
      %s227 = sphi 0, %s225
      %s228 = sphi 0, %s227
      %s242 = sphi 0, %s228
      %s246 = sphi 0, %s246
      %s248 = sphi 0, %s246
      %s249 = sphi 0, %s248
      %s263 = sphi 0, %s249
      %s269 = sphi 0, %s271
      %s272 = sphi 0, %s269
      %s273 = sphi 0, %s272
      %s289 = sphi 0, %s273
    $region4: #{tpu_custom_call.1} parent=1 // loop_header_branch
      %26 = sbr.rel (%p24) target = $region8
    $region5: #{tpu_custom_call.1} parent=1 // loop_body
      %s28 = ssub.s32 %s23, 1
      %s29 = ssub.s32 %s23, 2
      %s30 = sadd.s32 %s23, 1
      %s31 = ssub.s32 %s23, %s30
      %p32 = scmp.eq.s32.totalorder %s31, 0
      %s34 = sadd.s32 %s33, 1
      %s35 = scalar_select %p32, %s33, %s34
      %p38 = pneg %p32
      %p39 = scmp.eq.s32.totalorder %s23, 1
      %p40 = por %p38, %p39
      %p41 = scmp.ne.s32.totalorder %s33, %s36
      %p42 = scmp.eq.s32.totalorder %s23, 0
      %p43 = por %p41, %p42
      %p44 = scmp.ne.s32.totalorder %s33, %s36
      %p45 = scmp.eq.s32.totalorder %s28, 1
      %p46 = por %p44, %p45
      %p47 = scmp.ne.s32.totalorder %s36, %s37
      %p48 = scmp.eq.s32.totalorder %s28, 0
      %p49 = por %p47, %p48
      %p50 = scmp.ne.s32.totalorder %s36, %s37
      %p51 = scmp.eq.s32.totalorder %s29, 1
      %p52 = por %p50, %p51
      %p54 = scmp.ne.s32.totalorder %s37, %s53
      %p55 = scmp.eq.s32.totalorder %s29, 0
      %p56 = por %p54, %p55
      %s58 = sadd.s32 %s57, 1
      %p61 = scmp.eq.s32.totalorder %s23, 1
      %p62 = scmp.ne.s32.totalorder %s57, %s59
      %p63 = scmp.eq.s32.totalorder %s23, 0
      %p64 = por %p62, %p63
      %p65 = scmp.ne.s32.totalorder %s57, %s59
      %p66 = scmp.eq.s32.totalorder %s28, 1
      %p67 = por %p65, %p66
      %p68 = scmp.ne.s32.totalorder %s59, %s60
      %p69 = scmp.eq.s32.totalorder %s28, 0
      %p70 = por %p68, %p69
      %p71 = scmp.ne.s32.totalorder %s59, %s60
      %p72 = scmp.eq.s32.totalorder %s29, 1
      %p73 = por %p71, %p72
      %p75 = scmp.ne.s32.totalorder %s60, %s74
      %p76 = scmp.eq.s32.totalorder %s29, 0
      %p77 = por %p75, %p76
      %s79 = sadd.s32 %s78, 1
      %p82 = scmp.eq.s32.totalorder %s23, 1
      %p83 = scmp.ne.s32.totalorder %s78, %s80
      %p84 = scmp.eq.s32.totalorder %s23, 0
      %p85 = por %p83, %p84
      %p86 = scmp.ne.s32.totalorder %s78, %s80
      %p87 = scmp.eq.s32.totalorder %s28, 1
      %p88 = por %p86, %p87
      %p89 = scmp.ne.s32.totalorder %s80, %s81
      %p90 = scmp.eq.s32.totalorder %s28, 0
      %p91 = por %p89, %p90
      %p92 = scmp.ne.s32.totalorder %s80, %s81
      %p93 = scmp.eq.s32.totalorder %s29, 1
      %p94 = por %p92, %p93
      %p96 = scmp.ne.s32.totalorder %s81, %s95
      %p97 = scmp.eq.s32.totalorder %s29, 0
      %p98 = por %p96, %p97
      %s100 = sadd.s32 %s99, 1
      %p103 = scmp.eq.s32.totalorder %s23, 1
      %p104 = scmp.ne.s32.totalorder %s99, %s101
      %p105 = scmp.eq.s32.totalorder %s23, 0
      %p106 = por %p104, %p105
      %p107 = scmp.ne.s32.totalorder %s99, %s101
      %p108 = scmp.eq.s32.totalorder %s28, 1
      %p109 = por %p107, %p108
      %p110 = scmp.ne.s32.totalorder %s101, %s102
      %p111 = scmp.eq.s32.totalorder %s28, 0
      %p112 = por %p110, %p111
      %p113 = scmp.ne.s32.totalorder %s101, %s102
      %p114 = scmp.eq.s32.totalorder %s29, 1
      %p115 = por %p113, %p114
      %p117 = scmp.ne.s32.totalorder %s102, %s116
      %p118 = scmp.eq.s32.totalorder %s29, 0
      %p119 = por %p117, %p118
      %s121 = sadd.s32 %s120, 1
      %p124 = scmp.eq.s32.totalorder %s23, 1
      %p125 = scmp.ne.s32.totalorder %s120, %s122
      %p126 = scmp.eq.s32.totalorder %s23, 0
      %p127 = por %p125, %p126
      %p128 = scmp.ne.s32.totalorder %s120, %s122
      %p129 = scmp.eq.s32.totalorder %s28, 1
      %p130 = por %p128, %p129
      %p131 = scmp.ne.s32.totalorder %s122, %s123
      %p132 = scmp.eq.s32.totalorder %s28, 0
      %p133 = por %p131, %p132
      %p134 = scmp.ne.s32.totalorder %s122, %s123
      %p135 = scmp.eq.s32.totalorder %s29, 1
      %p136 = por %p134, %p135
      %p138 = scmp.ne.s32.totalorder %s123, %s137
      %p139 = scmp.eq.s32.totalorder %s29, 0
      %p140 = por %p138, %p139
      %s142 = sadd.s32 %s141, 1
      %p145 = scmp.eq.s32.totalorder %s23, 1
      %p146 = scmp.ne.s32.totalorder %s141, %s143
      %p147 = scmp.eq.s32.totalorder %s23, 0
      %p148 = por %p146, %p147
      %p149 = scmp.ne.s32.totalorder %s141, %s143
      %p150 = scmp.eq.s32.totalorder %s28, 1
      %p151 = por %p149, %p150
      %p152 = scmp.ne.s32.totalorder %s143, %s144
      %p153 = scmp.eq.s32.totalorder %s28, 0
      %p154 = por %p152, %p153
      %p155 = scmp.ne.s32.totalorder %s143, %s144
      %p156 = scmp.eq.s32.totalorder %s29, 1
      %p157 = por %p155, %p156
      %p159 = scmp.ne.s32.totalorder %s144, %s158
      %p160 = scmp.eq.s32.totalorder %s29, 0
      %p161 = por %p159, %p160
      %s163 = sadd.s32 %s162, 1
      %p166 = scmp.eq.s32.totalorder %s23, 1
      %p167 = scmp.ne.s32.totalorder %s162, %s164
      %p168 = scmp.eq.s32.totalorder %s23, 0
      %p169 = por %p167, %p168
      %p170 = scmp.ne.s32.totalorder %s162, %s164
      %p171 = scmp.eq.s32.totalorder %s28, 1
      %p172 = por %p170, %p171
      %p173 = scmp.ne.s32.totalorder %s164, %s165
      %p174 = scmp.eq.s32.totalorder %s28, 0
      %p175 = por %p173, %p174
      %p176 = scmp.ne.s32.totalorder %s164, %s165
      %p177 = scmp.eq.s32.totalorder %s29, 1
      %p178 = por %p176, %p177
      %p180 = scmp.ne.s32.totalorder %s165, %s179
      %p181 = scmp.eq.s32.totalorder %s29, 0
      %p182 = por %p180, %p181
      %s184 = sadd.s32 %s183, 1
      %p187 = scmp.eq.s32.totalorder %s23, 1
      %p188 = scmp.ne.s32.totalorder %s183, %s185
      %p189 = scmp.eq.s32.totalorder %s23, 0
      %p190 = por %p188, %p189
      %p191 = scmp.ne.s32.totalorder %s183, %s185
      %p192 = scmp.eq.s32.totalorder %s28, 1
      %p193 = por %p191, %p192
      %p194 = scmp.ne.s32.totalorder %s185, %s186
      %p195 = scmp.eq.s32.totalorder %s28, 0
      %p196 = por %p194, %p195
      %p197 = scmp.ne.s32.totalorder %s185, %s186
      %p198 = scmp.eq.s32.totalorder %s29, 1
      %p199 = por %p197, %p198
      %p201 = scmp.ne.s32.totalorder %s186, %s200
      %p202 = scmp.eq.s32.totalorder %s29, 0
      %p203 = por %p201, %p202
      %s205 = sadd.s32 %s204, 1
      %p208 = scmp.eq.s32.totalorder %s23, 1
      %p209 = scmp.ne.s32.totalorder %s204, %s206
      %p210 = scmp.eq.s32.totalorder %s23, 0
      %p211 = por %p209, %p210
      %p212 = scmp.ne.s32.totalorder %s204, %s206
      %p213 = scmp.eq.s32.totalorder %s28, 1
      %p214 = por %p212, %p213
      %p215 = scmp.ne.s32.totalorder %s206, %s207
      %p216 = scmp.eq.s32.totalorder %s28, 0
      %p217 = por %p215, %p216
      %p218 = scmp.ne.s32.totalorder %s206, %s207
      %p219 = scmp.eq.s32.totalorder %s29, 1
      %p220 = por %p218, %p219
      %p222 = scmp.ne.s32.totalorder %s207, %s221
      %p223 = scmp.eq.s32.totalorder %s29, 0
      %p224 = por %p222, %p223
      %s226 = sadd.s32 %s225, 1
      %p229 = scmp.eq.s32.totalorder %s23, 1
      %p230 = scmp.ne.s32.totalorder %s225, %s227
      %p231 = scmp.eq.s32.totalorder %s23, 0
      %p232 = por %p230, %p231
      %p233 = scmp.ne.s32.totalorder %s225, %s227
      %p234 = scmp.eq.s32.totalorder %s28, 1
      %p235 = por %p233, %p234
      %p236 = scmp.ne.s32.totalorder %s227, %s228
      %p237 = scmp.eq.s32.totalorder %s28, 0
      %p238 = por %p236, %p237
      %p239 = scmp.ne.s32.totalorder %s227, %s228
      %p240 = scmp.eq.s32.totalorder %s29, 1
      %p241 = por %p239, %p240
      %p243 = scmp.ne.s32.totalorder %s228, %s242
      %p244 = scmp.eq.s32.totalorder %s29, 0
      %p245 = por %p243, %p244
      %s247 = sadd.s32 %s246, 1
      %p250 = scmp.eq.s32.totalorder %s23, 1
      %p251 = scmp.ne.s32.totalorder %s246, %s248
      %p252 = scmp.eq.s32.totalorder %s23, 0
      %p253 = por %p251, %p252
      %p254 = scmp.ne.s32.totalorder %s246, %s248
      %p255 = scmp.eq.s32.totalorder %s28, 1
      %p256 = por %p254, %p255
      %p257 = scmp.ne.s32.totalorder %s248, %s249
      %p258 = scmp.eq.s32.totalorder %s28, 0
      %p259 = por %p257, %p258
      %p260 = scmp.ne.s32.totalorder %s248, %s249
      %p261 = scmp.eq.s32.totalorder %s29, 1
      %p262 = por %p260, %p261
      %p264 = scmp.ne.s32.totalorder %s249, %s263
      %p265 = scmp.eq.s32.totalorder %s29, 0
      %p266 = por %p264, %p265
      %s267 = ssub.s32 %s23, %s30
      %p268 = scmp.eq.s32.totalorder %s267, 0
      %s270 = sadd.s32 %s269, 1
      %s271 = scalar_select %p268, %s269, %s270
      %p274 = pneg %p268
      %p275 = scmp.eq.s32.totalorder %s23, 1
      %p276 = por %p274, %p275
      %p277 = scmp.ne.s32.totalorder %s269, %s272
      %p278 = scmp.eq.s32.totalorder %s23, 0
      %p279 = por %p277, %p278
      %p280 = scmp.ne.s32.totalorder %s269, %s272
      %p281 = scmp.eq.s32.totalorder %s28, 1
      %p282 = por %p280, %p281
      %p283 = scmp.ne.s32.totalorder %s272, %s273
      %p284 = scmp.eq.s32.totalorder %s28, 0
      %p285 = por %p283, %p284
      %p286 = scmp.ne.s32.totalorder %s272, %s273
      %p287 = scmp.eq.s32.totalorder %s29, 1
      %p288 = por %p286, %p287
      %p290 = scmp.ne.s32.totalorder %s273, %s289
      %p291 = scmp.eq.s32.totalorder %s29, 0
      %p292 = por %p290, %p291
      %p293 = scmp.le.s32.totalorder 1, %s23
      %p294 = scmp.lt.s32.totalorder %s23, 3
      %p295 = pnand %p293, %p294
      %p296 = pneg %p295
      // Predicated region
      $region9: #{tpu_custom_call.1} parent=5 // pred_check
        _
      $region10: #{tpu_custom_call.1} parent=5 // pred_check_branch
        %298 = sbr.rel (%p295) target = $region12
      $region11: #{tpu_custom_call.1} parent=5 // pred_region
        %s299 = ssub.s32 %s23, 1
        // Predicated region
        $region13: #{tpu_custom_call.1} parent=11 // pred_check
          %p300 = pneg %p70
        $region14: #{tpu_custom_call.1} parent=11 // pred_check_branch
          %302 = sbr.rel (%p300) target = $region16
        $region15: #{tpu_custom_call.1} parent=11 // pred_region
          %s304 = ssub.s32 256, 256
          %305 = vsyncadd [#allocation5], %s304
          %s306 = sshll.u32 [#allocation4], 4
          %s307 = int_to_ptr.vmem [resolvable:$true] %s306
          %312 = dma.hbm_to_vmem [thread:$0]  %s1, 256, %s307, [#allocation5], 128, 128, 8
        $region16: #{tpu_custom_call.1} parent=11 // pred_fallthru
          _
        // Predicated region
        $region17: #{tpu_custom_call.1} parent=11 // pred_check
          %p313 = pneg %p91
        $region18: #{tpu_custom_call.1} parent=11 // pred_check_branch
          %315 = sbr.rel (%p313) target = $region20
        $region19: #{tpu_custom_call.1} parent=11 // pred_region
          %s317 = ssub.s32 256, 256
          %318 = vsyncadd [#allocation8], %s317
          %s319 = sshll.u32 [#allocation7], 4
          %s320 = int_to_ptr.vmem [resolvable:$true] %s319
          %325 = dma.hbm_to_vmem [thread:$0]  %s2, 256, %s320, [#allocation8], 128, 128, 8
        $region20: #{tpu_custom_call.1} parent=11 // pred_fallthru
          _
        // Predicated region
        $region21: #{tpu_custom_call.1} parent=11 // pred_check
          %p326 = pneg %p112
        $region22: #{tpu_custom_call.1} parent=11 // pred_check_branch
          %328 = sbr.rel (%p326) target = $region24
        $region23: #{tpu_custom_call.1} parent=11 // pred_region
          _
        $region24: #{tpu_custom_call.1} parent=11 // pred_fallthru
          _
        // Predicated region
        $region25: #{tpu_custom_call.1} parent=11 // pred_check
          %p329 = pneg %p133
        $region26: #{tpu_custom_call.1} parent=11 // pred_check_branch
          %331 = sbr.rel (%p329) target = $region28
        $region27: #{tpu_custom_call.1} parent=11 // pred_region
          _
        $region28: #{tpu_custom_call.1} parent=11 // pred_fallthru
          _
        // Predicated region
        $region29: #{tpu_custom_call.1} parent=11 // pred_check
          %p332 = pneg %p154
        $region30: #{tpu_custom_call.1} parent=11 // pred_check_branch
          %334 = sbr.rel (%p332) target = $region32
        $region31: #{tpu_custom_call.1} parent=11 // pred_region
          _
        $region32: #{tpu_custom_call.1} parent=11 // pred_fallthru
          _
        // Predicated region
        $region33: #{tpu_custom_call.1} parent=11 // pred_check
          %p335 = pneg %p175
        $region34: #{tpu_custom_call.1} parent=11 // pred_check_branch
          %337 = sbr.rel (%p335) target = $region36
        $region35: #{tpu_custom_call.1} parent=11 // pred_region
          _
        $region36: #{tpu_custom_call.1} parent=11 // pred_fallthru
          _
        // Predicated region
        $region37: #{tpu_custom_call.1} parent=11 // pred_check
          %p338 = pneg %p196
        $region38: #{tpu_custom_call.1} parent=11 // pred_check_branch
          %340 = sbr.rel (%p338) target = $region40
        $region39: #{tpu_custom_call.1} parent=11 // pred_region
          %s342 = ssub.s32 512, 512
          %343 = vsyncadd [#allocation8], %s342
          %s344 = sshll.u32 [#allocation9], 4
          %s345 = int_to_ptr.vmem [resolvable:$true] %s344
          %350 = dma.hbm_to_vmem [thread:$0]  %s7, 512, %s345, [#allocation8], 128, 128, 8
        $region40: #{tpu_custom_call.1} parent=11 // pred_fallthru
          _
        // Predicated region
        $region41: #{tpu_custom_call.1} parent=11 // pred_check
          %p351 = pneg %p217
        $region42: #{tpu_custom_call.1} parent=11 // pred_check_branch
          %353 = sbr.rel (%p351) target = $region44
        $region43: #{tpu_custom_call.1} parent=11 // pred_region
          %s355 = ssub.s32 16, 16
          %356 = vsyncadd [#allocation11], %s355
          %s358 = sshll.u32 [#allocation10], 4
          %s359 = int_to_ptr.vmem [resolvable:$true] %s358
          %361 = dma.hbm_to_vmem [thread:$0]  %s8, 16, %s359, [#allocation11]
        $region44: #{tpu_custom_call.1} parent=11 // pred_fallthru
          _
        // Predicated region
        $region45: #{tpu_custom_call.1} parent=11 // pred_check
          %p362 = pneg %p238
        $region46: #{tpu_custom_call.1} parent=11 // pred_check_branch
          %364 = sbr.rel (%p362) target = $region48
        $region47: #{tpu_custom_call.1} parent=11 // pred_region
          _
        $region48: #{tpu_custom_call.1} parent=11 // pred_fallthru
          _
        // Predicated region
        $region49: #{tpu_custom_call.1} parent=11 // pred_check
          %p365 = pneg %p259
        $region50: #{tpu_custom_call.1} parent=11 // pred_check_branch
          %367 = sbr.rel (%p365) target = $region52
        $region51: #{tpu_custom_call.1} parent=11 // pred_region
          _
        $region52: #{tpu_custom_call.1} parent=11 // pred_fallthru
          _
      $region12: #{tpu_custom_call.1} parent=5 // pred_fallthru
        _
      %p368 = scmp.lt.s32.totalorder %s23, 2
      // Predicated region
      $region53: #{tpu_custom_call.1} parent=5 // pred_check
        %p369 = pneg %p368
      $region54: #{tpu_custom_call.1} parent=5 // pred_check_branch
        %371 = sbr.rel (%p369) target = $region56
      $region55: #{tpu_custom_call.1} parent=5 // pred_region
        // Predicated region
        $region57: #{tpu_custom_call.1} parent=55 // pred_check
          %p372 = pneg %p43
        $region58: #{tpu_custom_call.1} parent=55 // pred_check_branch
          %374 = sbr.rel (%p372) target = $region60
        $region59: #{tpu_custom_call.1} parent=55 // pred_region
          %p375 = scmp.lt.s32.totalorder %s23, 1
          %s376 = scalar_select %p375, %s23, 1
          %s377 = smul.addr %s376, 8
          %s378 = scalar_lea.vmem %s0, %s377
        $region60: #{tpu_custom_call.1} parent=55 // pred_fallthru
          _
      $region56: #{tpu_custom_call.1} parent=5 // pred_fallthru
        _
      %p379 = scmp.le.s32.totalorder 1, %s23
      %p380 = scmp.lt.s32.totalorder %s23, 3
      %p381 = pnand %p379, %p380
      %p382 = pneg %p381
      // Predicated region
      $region61: #{tpu_custom_call.1} parent=5 // pred_check
        _
      $region62: #{tpu_custom_call.1} parent=5 // pred_check_branch
        %384 = sbr.rel (%p381) target = $region64
      $region63: #{tpu_custom_call.1} parent=5 // pred_region
        %s385 = ssub.s32 %s23, 1
        // Predicated region
        $region65: #{tpu_custom_call.1} parent=63 // pred_check
          %p386 = pneg %p70
        $region66: #{tpu_custom_call.1} parent=63 // pred_check_branch
          %388 = sbr.rel (%p386) target = $region68
        $region67: #{tpu_custom_call.1} parent=63 // pred_region
          %389 = dma.done [#allocation5], 256
        $region68: #{tpu_custom_call.1} parent=63 // pred_fallthru
          _
        // Predicated region
        $region69: #{tpu_custom_call.1} parent=63 // pred_check
          %p390 = pneg %p91
        $region70: #{tpu_custom_call.1} parent=63 // pred_check_branch
          %392 = sbr.rel (%p390) target = $region72
        $region71: #{tpu_custom_call.1} parent=63 // pred_region
          %393 = dma.done [#allocation8], 256
        $region72: #{tpu_custom_call.1} parent=63 // pred_fallthru
          _
        // Predicated region
        $region73: #{tpu_custom_call.1} parent=63 // pred_check
          %p394 = pneg %p196
        $region74: #{tpu_custom_call.1} parent=63 // pred_check_branch
          %396 = sbr.rel (%p394) target = $region76
        $region75: #{tpu_custom_call.1} parent=63 // pred_region
          %397 = dma.done [#allocation8], 512
        $region76: #{tpu_custom_call.1} parent=63 // pred_fallthru
          _
        // Predicated region
        $region77: #{tpu_custom_call.1} parent=63 // pred_check
          %p398 = pneg %p217
        $region78: #{tpu_custom_call.1} parent=63 // pred_check_branch
          %400 = sbr.rel (%p398) target = $region80
        $region79: #{tpu_custom_call.1} parent=63 // pred_region
          %401 = dma.done [#allocation11], 16
        $region80: #{tpu_custom_call.1} parent=63 // pred_fallthru
          _
        %p402 = scmp.lt.s32.totalorder %s28, 1
        %s403 = scalar_select %p402, %s28, 1
        %s404 = smul.addr %s403, 8
        %s405 = scalar_lea.vmem %s0, %s404
        %p406 = pneg %p49
        %p407 = pneg %p46
        %p408 = pneg %p70
        %p409 = pneg %p67
        %p410 = pneg %p91
        %p411 = pneg %p88
        %p412 = pneg %p112
        %p413 = pneg %p109
        %p414 = pneg %p133
        %p415 = pneg %p130
        %p416 = pneg %p154
        %p417 = pneg %p151
        %p418 = pneg %p175
        %p419 = pneg %p172
        %p420 = pneg %p196
        %p421 = pneg %p193
        %p422 = pneg %p217
        %p423 = pneg %p214
        %p424 = pneg %p238
        %p425 = pneg %p235
        %p426 = pneg %p259
        %p427 = pneg %p256
        %p428 = pneg %p285
        %p429 = pneg %p282
        %s430 = sand.u32 %s272, 1
        %s431 = scalar_lea.sflag [#allocation6], %s430
        %s432 = sand.u32 %s272, 1
        %s433 = smul.addr %s432, 8
        %s434 = scalar_lea.vmem [#allocation12], %s433
        %p435 = scmp.lt.s32.totalorder %s28, 1
        %s436 = scalar_select %p435, %s28, 1
        %s437 = smul.addr %s436, 8
        %s438 = scalar_lea.vmem %s0, %s437
        %p439 = scmp.eq.s32.totalorder %s28, 0
        // Predicated region
        $region81: #{tpu_custom_call.1} parent=63 // pred_check
          %p440 = pneg %p439
        $region82: #{tpu_custom_call.1} parent=63 // pred_check_branch
          %442 = sbr.rel (%p440) target = $region84
        $region83: #{tpu_custom_call.1} parent=63 // pred_region
          %v443 = vld [vmem:[#allocation4] sm:$0xff]
          %v444 = vld [vmem:[#allocation4 + $0x8] sm:$0xff]
          %v445 = vld [vmem:[%s5] sm:$0xff]
          %v446 = vld [vmem:[%s5 + $0x8] sm:$0xff]
          %v447 = vld [vmem:[%s5 + $0x10] sm:$0xff]
          %v448 = vld [vmem:[%s5 + $0x18] sm:$0xff]
          %v449 = vld [vmem:[%s6] sm:$0x1]
          %v451 = vlaneseq
          %v452 = vshrl.u32 %v451, 7
          %v453 = vsub.s32 0, %v452
          %v454 = vrot.slane %v449, %v453
          %vm456 = vcmask 392192
          %v458 = vsel %vm456, %v443, 0
          %v461 = vsel %vm456, %v444, 0
          %v464 = vsel %vm456, %v445, 0
          %v467 = vsel %vm456, %v446, 0
          %v470 = vsel %vm456, %v447, 0
          %v473 = vsel %vm456, %v448, 0
          %475 = vmatprep.subr.mxu0 0.0
          %476 = vmatpush1.xpose.msra.mxu0 %v464
          %477 = vmatprep.subr.mxu0 0.0
          %478 = vmatpush1.xpose.msra.mxu0 %v467
          %479 = vmatprep.subr.mxu0 0.0
          %480 = vmatpush1.xpose.msra.mxu0 %v470
          %481 = vmatprep.subr.mxu0 0.0
          %482 = vmatpush1.xpose.msra.mxu0 %v473
          %483 = vmatprep.subr.mxu0 0.0
          %484 = vmatpush1.xpose.msra.mxu0 0.0
          %485 = vmatprep.subr.mxu0 0.0
          %486 = vmatpush1.xpose.msra.mxu0 0.0
          %487 = vmatprep.subr.mxu0 0.0
          %488 = vmatpush1.xpose.msra.mxu0 0.0
          %489 = vmatprep.subr.mxu0 0.0
          %490 = vmatpush1.xpose.msra.mxu0 0.0
          %491 = vmatprep.subr.mxu0 0.0
          %492 = vmatpush1.xpose.msra.mxu0 0.0
          %493 = vmatprep.subr.mxu0 0.0
          %494 = vmatpush1.xpose.msra.mxu0 0.0
          %495 = vmatprep.subr.mxu0 0.0
          %496 = vmatpush1.xpose.msra.mxu0 0.0
          %497 = vmatprep.subr.mxu0 0.0
          %498 = vmatpush1.xpose.msra.mxu0 0.0
          %499 = vmatprep.subr.mxu0 0.0
          %500 = vmatpush1.xpose.msra.mxu0 0.0
          %501 = vmatprep.subr.mxu0 0.0
          %502 = vmatpush1.xpose.msra.mxu0 0.0
          %503 = vmatprep.subr.mxu0 0.0
          %504 = vmatpush1.xpose.msra.mxu0 0.0
          %505 = vmatprep.subr.mxu0 0.0
          %506 = vmatpush1.xpose.msra.mxu0 0.0
          %507 = vmatprep.subr.mxu0 0.0
          %508 = vmatpush1.xpose.msra.mxu0 0.0
          %509 = vmatprep.subr.mxu0 0.0
          %510 = vmatpush1.xpose.msra.mxu0 0.0
          %511 = vmatprep.subr.mxu0 0.0
          %512 = vmatpush1.xpose.msra.mxu0 0.0
          %513 = vmatprep.subr.mxu0 0.0
          %514 = vmatpush1.xpose.msra.mxu0 0.0
          %515 = vmatprep.subr.mxu0 0.0
          %516 = vmatpush1.xpose.msra.mxu0 0.0
          %517 = vmatprep.subr.mxu0 0.0
          %518 = vmatpush1.xpose.msra.mxu0 0.0
          %519 = vmatprep.subr.mxu0 0.0
          %520 = vmatpush1.xpose.msra.mxu0 0.0
          %521 = vmatprep.subr.mxu0 0.0
          %522 = vmatpush1.xpose.msra.mxu0 0.0
          %523 = vmatprep.subr.mxu0 0.0
          %524 = vmatpush1.xpose.msra.mxu0 0.0
          %525 = vmatprep.subr.mxu0 0.0
          %526 = vmatpush1.xpose.msra.mxu0 0.0
          %527 = vmatprep.subr.mxu0 0.0
          %528 = vmatpush1.xpose.msra.mxu0 0.0
          %529 = vmatprep.subr.mxu0 0.0
          %530 = vmatpush1.xpose.msra.mxu0 0.0
          %531 = vmatprep.subr.mxu0 0.0
          %532 = vmatpush1.xpose.msra.mxu0 0.0
          %533 = vmatprep.subr.mxu0 0.0
          %534 = vmatpush1.xpose.msra.mxu0 0.0
          %535 = vmatprep.subr.mxu0 0.0
          %536 = vmatpush1.xpose.msra.mxu0 0.0
          %537 = vmatprep.subr.mxu0 0.0
          %538 = vmatpush1.xpose.msra.mxu0 0.0
          %539 = vmatprep.mubr.f32.mxu0 0.0
          %540 = vmatmul.mubr.f32.gmra.mrb[0].mxu0 %v458
          %v541 = vpop.f32.mrb[0].mxu0
          %v542 = vadd.f32 %v454, %v541
          %v543 = vpop.f32.mrb[0].mxu0
          %544 = vmatprep.mubr.f32.mxu0 0.0
          %545 = vmatmul.mubr.f32.gmra.mrb[0].mxu0 %v461
          %v546 = vpop.f32.mrb[0].mxu0
          %v547 = vadd.f32 %v454, %v546
          %v548 = vpop.f32.mrb[0].mxu0
          %549 = vdwg.mxu0
          %vm550 = vcmask 261120
          %551 = vst.msk [vmem:[#allocation2] sm:$0xff] %vm550, %v542
          %552 = vst.msk [vmem:[#allocation2 + $0x8] sm:$0xff] %vm550, %v547
          %v553 = vld [vmem:[#allocation7] sm:$0xff]
          %v554 = vld [vmem:[#allocation7 + $0x8] sm:$0xff]
          %v555 = vld [vmem:[#allocation9] sm:$0xff]
          %v556 = vld [vmem:[#allocation9 + $0x8] sm:$0xff]
          %v557 = vld [vmem:[#allocation9 + $0x10] sm:$0xff]
          %v558 = vld [vmem:[#allocation9 + $0x18] sm:$0xff]
          %v559 = vld [vmem:[#allocation10] sm:$0x1]
          %v561 = vlaneseq
          %v562 = vshrl.u32 %v561, 7
          %v563 = vsub.s32 0, %v562
          %v564 = vrot.slane %v559, %v563
          %v567 = vsel %vm456, %v553, 0
          %v570 = vsel %vm456, %v554, 0
          %v573 = vsel %vm456, %v555, 0
          %v576 = vsel %vm456, %v556, 0
          %v579 = vsel %vm456, %v557, 0
          %v582 = vsel %vm456, %v558, 0
          %584 = vmatprep.subr.mxu0 0.0
          %585 = vmatpush1.xpose.msra.mxu0 %v573
          %586 = vmatprep.subr.mxu0 0.0
          %587 = vmatpush1.xpose.msra.mxu0 %v576
          %588 = vmatprep.subr.mxu0 0.0
          %589 = vmatpush1.xpose.msra.mxu0 %v579
          %590 = vmatprep.subr.mxu0 0.0
          %591 = vmatpush1.xpose.msra.mxu0 %v582
          %592 = vmatprep.subr.mxu0 0.0
          %593 = vmatpush1.xpose.msra.mxu0 0.0
          %594 = vmatprep.subr.mxu0 0.0
          %595 = vmatpush1.xpose.msra.mxu0 0.0
          %596 = vmatprep.subr.mxu0 0.0
          %597 = vmatpush1.xpose.msra.mxu0 0.0
          %598 = vmatprep.subr.mxu0 0.0
          %599 = vmatpush1.xpose.msra.mxu0 0.0
          %600 = vmatprep.subr.mxu0 0.0
          %601 = vmatpush1.xpose.msra.mxu0 0.0
          %602 = vmatprep.subr.mxu0 0.0
          %603 = vmatpush1.xpose.msra.mxu0 0.0
          %604 = vmatprep.subr.mxu0 0.0
          %605 = vmatpush1.xpose.msra.mxu0 0.0
          %606 = vmatprep.subr.mxu0 0.0
          %607 = vmatpush1.xpose.msra.mxu0 0.0
          %608 = vmatprep.subr.mxu0 0.0
          %609 = vmatpush1.xpose.msra.mxu0 0.0
          %610 = vmatprep.subr.mxu0 0.0
          %611 = vmatpush1.xpose.msra.mxu0 0.0
          %612 = vmatprep.subr.mxu0 0.0
          %613 = vmatpush1.xpose.msra.mxu0 0.0
          %614 = vmatprep.subr.mxu0 0.0
          %615 = vmatpush1.xpose.msra.mxu0 0.0
          %616 = vmatprep.subr.mxu0 0.0
          %617 = vmatpush1.xpose.msra.mxu0 0.0
          %618 = vmatprep.subr.mxu0 0.0
          %619 = vmatpush1.xpose.msra.mxu0 0.0
          %620 = vmatprep.subr.mxu0 0.0
          %621 = vmatpush1.xpose.msra.mxu0 0.0
          %622 = vmatprep.subr.mxu0 0.0
          %623 = vmatpush1.xpose.msra.mxu0 0.0
          %624 = vmatprep.subr.mxu0 0.0
          %625 = vmatpush1.xpose.msra.mxu0 0.0
          %626 = vmatprep.subr.mxu0 0.0
          %627 = vmatpush1.xpose.msra.mxu0 0.0
          %628 = vmatprep.subr.mxu0 0.0
          %629 = vmatpush1.xpose.msra.mxu0 0.0
          %630 = vmatprep.subr.mxu0 0.0
          %631 = vmatpush1.xpose.msra.mxu0 0.0
          %632 = vmatprep.subr.mxu0 0.0
          %633 = vmatpush1.xpose.msra.mxu0 0.0
          %634 = vmatprep.subr.mxu0 0.0
          %635 = vmatpush1.xpose.msra.mxu0 0.0
          %636 = vmatprep.subr.mxu0 0.0
          %637 = vmatpush1.xpose.msra.mxu0 0.0
          %638 = vmatprep.subr.mxu0 0.0
          %639 = vmatpush1.xpose.msra.mxu0 0.0
          %640 = vmatprep.subr.mxu0 0.0
          %641 = vmatpush1.xpose.msra.mxu0 0.0
          %642 = vmatprep.subr.mxu0 0.0
          %643 = vmatpush1.xpose.msra.mxu0 0.0
          %644 = vmatprep.subr.mxu0 0.0
          %645 = vmatpush1.xpose.msra.mxu0 0.0
          %646 = vmatprep.subr.mxu0 0.0
          %647 = vmatpush1.xpose.msra.mxu0 0.0
          %648 = vmatprep.mubr.f32.mxu0 0.0
          %649 = vmatmul.mubr.f32.gmra.mrb[0].mxu0 %v567
          %v650 = vpop.f32.mrb[0].mxu0
          %v651 = vadd.f32 %v564, %v650
          %v652 = vpop.f32.mrb[0].mxu0
          %653 = vmatprep.mubr.f32.mxu0 0.0
          %654 = vmatmul.mubr.f32.gmra.mrb[0].mxu0 %v570
          %v655 = vpop.f32.mrb[0].mxu0
          %v656 = vadd.f32 %v564, %v655
          %v657 = vpop.f32.mrb[0].mxu0
          %658 = vdwg.mxu0
          %659 = vst.msk [vmem:[#allocation3] sm:$0xff] %vm550, %v651
          %660 = vst.msk [vmem:[#allocation3 + $0x8] sm:$0xff] %vm550, %v656
        $region84: #{tpu_custom_call.1} parent=63 // pred_fallthru
          _
        %v661 = vld [vmem:[%s438] sm:$0xff]
        %v662 = vld [vmem:[%s3] sm:$0xff]
        %v663 = vld [vmem:[%s3 + $0x8] sm:$0xff]
        %v664 = vld [vmem:[%s3 + $0x10] sm:$0xff]
        %v665 = vld [vmem:[%s3 + $0x18] sm:$0xff]
        %v666 = vld [vmem:[%s4] sm:$0x1]
        %v668 = vlaneseq
        %v669 = vshrl.u32 %v668, 7
        %v670 = vsub.s32 0, %v669
        %v671 = vrot.slane %v666, %v670
        %vm673 = vcmask 261120
        %v675 = vsel %vm673, %v661, 0
        %v678 = vsel %vm673, %v662, 0
        %v681 = vsel %vm673, %v663, 0
        %v684 = vsel %vm673, %v664, 0
        %v687 = vsel %vm673, %v665, 0
        %689 = vmatprep.subr.mxu0 0.0
        %690 = vmatpush1.xpose.msra.mxu0 %v678
        %691 = vmatprep.subr.mxu0 0.0
        %692 = vmatpush1.xpose.msra.mxu0 %v681
        %693 = vmatprep.subr.mxu0 0.0
        %694 = vmatpush1.xpose.msra.mxu0 %v684
        %695 = vmatprep.subr.mxu0 0.0
        %696 = vmatpush1.xpose.msra.mxu0 %v687
        %697 = vmatprep.subr.mxu0 0.0
        %698 = vmatpush1.xpose.msra.mxu0 0.0
        %699 = vmatprep.subr.mxu0 0.0
        %700 = vmatpush1.xpose.msra.mxu0 0.0
        %701 = vmatprep.subr.mxu0 0.0
        %702 = vmatpush1.xpose.msra.mxu0 0.0
        %703 = vmatprep.subr.mxu0 0.0
        %704 = vmatpush1.xpose.msra.mxu0 0.0
        %705 = vmatprep.subr.mxu0 0.0
        %706 = vmatpush1.xpose.msra.mxu0 0.0
        %707 = vmatprep.subr.mxu0 0.0
        %708 = vmatpush1.xpose.msra.mxu0 0.0
        %709 = vmatprep.subr.mxu0 0.0
        %710 = vmatpush1.xpose.msra.mxu0 0.0
        %711 = vmatprep.subr.mxu0 0.0
        %712 = vmatpush1.xpose.msra.mxu0 0.0
        %713 = vmatprep.subr.mxu0 0.0
        %714 = vmatpush1.xpose.msra.mxu0 0.0
        %715 = vmatprep.subr.mxu0 0.0
        %716 = vmatpush1.xpose.msra.mxu0 0.0
        %717 = vmatprep.subr.mxu0 0.0
        %718 = vmatpush1.xpose.msra.mxu0 0.0
        %719 = vmatprep.subr.mxu0 0.0
        %720 = vmatpush1.xpose.msra.mxu0 0.0
        %721 = vmatprep.subr.mxu0 0.0
        %722 = vmatpush1.xpose.msra.mxu0 0.0
        %723 = vmatprep.subr.mxu0 0.0
        %724 = vmatpush1.xpose.msra.mxu0 0.0
        %725 = vmatprep.subr.mxu0 0.0
        %726 = vmatpush1.xpose.msra.mxu0 0.0
        %727 = vmatprep.subr.mxu0 0.0
        %728 = vmatpush1.xpose.msra.mxu0 0.0
        %729 = vmatprep.subr.mxu0 0.0
        %730 = vmatpush1.xpose.msra.mxu0 0.0
        %731 = vmatprep.subr.mxu0 0.0
        %732 = vmatpush1.xpose.msra.mxu0 0.0
        %733 = vmatprep.subr.mxu0 0.0
        %734 = vmatpush1.xpose.msra.mxu0 0.0
        %735 = vmatprep.subr.mxu0 0.0
        %736 = vmatpush1.xpose.msra.mxu0 0.0
        %737 = vmatprep.subr.mxu0 0.0
        %738 = vmatpush1.xpose.msra.mxu0 0.0
        %739 = vmatprep.subr.mxu0 0.0
        %740 = vmatpush1.xpose.msra.mxu0 0.0
        %741 = vmatprep.subr.mxu0 0.0
        %742 = vmatpush1.xpose.msra.mxu0 0.0
        %743 = vmatprep.subr.mxu0 0.0
        %744 = vmatpush1.xpose.msra.mxu0 0.0
        %745 = vmatprep.subr.mxu0 0.0
        %746 = vmatpush1.xpose.msra.mxu0 0.0
        %747 = vmatprep.subr.mxu0 0.0
        %748 = vmatpush1.xpose.msra.mxu0 0.0
        %749 = vmatprep.subr.mxu0 0.0
        %750 = vmatpush1.xpose.msra.mxu0 0.0
        %751 = vmatprep.subr.mxu0 0.0
        %752 = vmatpush1.xpose.msra.mxu0 0.0
        %753 = vmatprep.mubr.f32.mxu0 0.0
        %754 = vmatmul.mubr.f32.gmra.mrb[0].mxu0 %v675
        %v755 = vpop.f32.mrb[0].mxu0
        %v756 = vadd.f32 %v671, %v755
        %v757 = vpop.f32.mrb[0].mxu0
        %758 = vdwg.mxu0
        %v759 = vmul.f32 %v756, 0.35355338
        %v760 = vld [vmem:[#allocation2] sm:$0xff]
        %v761 = vld [vmem:[#allocation2 + $0x8] sm:$0xff]
        %v762 = vld [vmem:[#allocation3] sm:$0xff]
        %v763 = vld [vmem:[#allocation3 + $0x8] sm:$0xff]
        %vm764 = vcmask 64512
        %v766 = vsel %vm764, %v759, 0
        %v769 = vsel %vm764, %v760, 0
        %v772 = vsel %vm764, %v761, 0
        %774 = vmatprep.subr.mxu0 0.0
        %775 = vmatpush1.xpose.msra.mxu0 %v769
        %776 = vmatprep.subr.mxu0 0.0
        %777 = vmatpush1.xpose.msra.mxu0 %v772
        %778 = vmatprep.subr.mxu0 0.0
        %779 = vmatpush1.xpose.msra.mxu0 0.0
        %780 = vmatprep.subr.mxu0 0.0
        %781 = vmatpush1.xpose.msra.mxu0 0.0
        %782 = vmatprep.subr.mxu0 0.0
        %783 = vmatpush1.xpose.msra.mxu0 0.0
        %784 = vmatprep.subr.mxu0 0.0
        %785 = vmatpush1.xpose.msra.mxu0 0.0
        %786 = vmatprep.subr.mxu0 0.0
        %787 = vmatpush1.xpose.msra.mxu0 0.0
        %788 = vmatprep.subr.mxu0 0.0
        %789 = vmatpush1.xpose.msra.mxu0 0.0
        %790 = vmatprep.subr.mxu0 0.0
        %791 = vmatpush1.xpose.msra.mxu0 0.0
        %792 = vmatprep.subr.mxu0 0.0
        %793 = vmatpush1.xpose.msra.mxu0 0.0
        %794 = vmatprep.subr.mxu0 0.0
        %795 = vmatpush1.xpose.msra.mxu0 0.0
        %796 = vmatprep.subr.mxu0 0.0
        %797 = vmatpush1.xpose.msra.mxu0 0.0
        %798 = vmatprep.subr.mxu0 0.0
        %799 = vmatpush1.xpose.msra.mxu0 0.0
        %800 = vmatprep.subr.mxu0 0.0
        %801 = vmatpush1.xpose.msra.mxu0 0.0
        %802 = vmatprep.subr.mxu0 0.0
        %803 = vmatpush1.xpose.msra.mxu0 0.0
        %804 = vmatprep.subr.mxu0 0.0
        %805 = vmatpush1.xpose.msra.mxu0 0.0
        %806 = vmatprep.subr.mxu0 0.0
        %807 = vmatpush1.xpose.msra.mxu0 0.0
        %808 = vmatprep.subr.mxu0 0.0
        %809 = vmatpush1.xpose.msra.mxu0 0.0
        %810 = vmatprep.subr.mxu0 0.0
        %811 = vmatpush1.xpose.msra.mxu0 0.0
        %812 = vmatprep.subr.mxu0 0.0
        %813 = vmatpush1.xpose.msra.mxu0 0.0
        %814 = vmatprep.subr.mxu0 0.0
        %815 = vmatpush1.xpose.msra.mxu0 0.0
        %816 = vmatprep.subr.mxu0 0.0
        %817 = vmatpush1.xpose.msra.mxu0 0.0
        %818 = vmatprep.subr.mxu0 0.0
        %819 = vmatpush1.xpose.msra.mxu0 0.0
        %820 = vmatprep.subr.mxu0 0.0
        %821 = vmatpush1.xpose.msra.mxu0 0.0
        %822 = vmatprep.subr.mxu0 0.0
        %823 = vmatpush1.xpose.msra.mxu0 0.0
        %824 = vmatprep.subr.mxu0 0.0
        %825 = vmatpush1.xpose.msra.mxu0 0.0
        %826 = vmatprep.subr.mxu0 0.0
        %827 = vmatpush1.xpose.msra.mxu0 0.0
        %828 = vmatprep.subr.mxu0 0.0
        %829 = vmatpush1.xpose.msra.mxu0 0.0
        %830 = vmatprep.subr.mxu0 0.0
        %831 = vmatpush1.xpose.msra.mxu0 0.0
        %832 = vmatprep.subr.mxu0 0.0
        %833 = vmatpush1.xpose.msra.mxu0 0.0
        %834 = vmatprep.subr.mxu0 0.0
        %835 = vmatpush1.xpose.msra.mxu0 0.0
        %836 = vmatprep.subr.mxu0 0.0
        %837 = vmatpush1.xpose.msra.mxu0 0.0
        %838 = vmatprep.mubr.f32.mxu0 0.0
        %839 = vmatmul.mubr.f32.gmra.mrb[0].mxu0 %v766
        %v840 = vpop.f32.mrb[0].mxu0
        %v841 = vadd.f32 0.0, %v840
        %v842 = vpop.f32.mrb[0].mxu0
        %843 = vdwg.mxu0
        %vm844 = vcmask 130048
        %v845 = vsel %vm844, %v841, -inf
        %846 = vmax.xlane.f32.xlu0 %v845
        %v847 = vpop.xlane.xlu0 %846
        %v848 = vsub.f32 %v841, %v847
        %v849 = vmul.f32 %v848, 1.442695
        %v850 = vpow.pop %v849
        %v851 = vsel %vm844, %v850, 0.0
        %852 = vadd.xlane.f32.xlu0 %v851
        %v853 = vpop.xlane.xlu0 %852
        %v854 = vrcp.pop %v853
        %v855 = vmul.f32 %v850, %v854
        %v857 = vsel %vm844, %v855, 0
        %859 = vmatprep.subr.mxu0 0.0
        %860 = vmatpush1.msra.mxu0 %v762
        %861 = vmatprep.subr.mxu0 0.0
        %862 = vmatpush1.msra.mxu0 %v763
        %863 = vmatprep.subr.mxu0 0.0
        %864 = vmatpush1.msra.mxu0 0.0
        %865 = vmatprep.subr.mxu0 0.0
        %866 = vmatpush1.msra.mxu0 0.0
        %867 = vmatprep.subr.mxu0 0.0
        %868 = vmatpush1.msra.mxu0 0.0
        %869 = vmatprep.subr.mxu0 0.0
        %870 = vmatpush1.msra.mxu0 0.0
        %871 = vmatprep.subr.mxu0 0.0
        %872 = vmatpush1.msra.mxu0 0.0
        %873 = vmatprep.subr.mxu0 0.0
        %874 = vmatpush1.msra.mxu0 0.0
        %875 = vmatprep.subr.mxu0 0.0
        %876 = vmatpush1.msra.mxu0 0.0
        %877 = vmatprep.subr.mxu0 0.0
        %878 = vmatpush1.msra.mxu0 0.0
        %879 = vmatprep.subr.mxu0 0.0
        %880 = vmatpush1.msra.mxu0 0.0
        %881 = vmatprep.subr.mxu0 0.0
        %882 = vmatpush1.msra.mxu0 0.0
        %883 = vmatprep.subr.mxu0 0.0
        %884 = vmatpush1.msra.mxu0 0.0
        %885 = vmatprep.subr.mxu0 0.0
        %886 = vmatpush1.msra.mxu0 0.0
        %887 = vmatprep.subr.mxu0 0.0
        %888 = vmatpush1.msra.mxu0 0.0
        %889 = vmatprep.subr.mxu0 0.0
        %890 = vmatpush1.msra.mxu0 0.0
        %891 = vmatprep.subr.mxu0 0.0
        %892 = vmatpush1.msra.mxu0 0.0
        %893 = vmatprep.subr.mxu0 0.0
        %894 = vmatpush1.msra.mxu0 0.0
        %895 = vmatprep.subr.mxu0 0.0
        %896 = vmatpush1.msra.mxu0 0.0
        %897 = vmatprep.subr.mxu0 0.0
        %898 = vmatpush1.msra.mxu0 0.0
        %899 = vmatprep.subr.mxu0 0.0
        %900 = vmatpush1.msra.mxu0 0.0
        %901 = vmatprep.subr.mxu0 0.0
        %902 = vmatpush1.msra.mxu0 0.0
        %903 = vmatprep.subr.mxu0 0.0
        %904 = vmatpush1.msra.mxu0 0.0
        %905 = vmatprep.subr.mxu0 0.0
        %906 = vmatpush1.msra.mxu0 0.0
        %907 = vmatprep.subr.mxu0 0.0
        %908 = vmatpush1.msra.mxu0 0.0
        %909 = vmatprep.subr.mxu0 0.0
        %910 = vmatpush1.msra.mxu0 0.0
        %911 = vmatprep.subr.mxu0 0.0
        %912 = vmatpush1.msra.mxu0 0.0
        %913 = vmatprep.subr.mxu0 0.0
        %914 = vmatpush1.msra.mxu0 0.0
        %915 = vmatprep.subr.mxu0 0.0
        %916 = vmatpush1.msra.mxu0 0.0
        %917 = vmatprep.subr.mxu0 0.0
        %918 = vmatpush1.msra.mxu0 0.0
        %919 = vmatprep.subr.mxu0 0.0
        %920 = vmatpush1.msra.mxu0 0.0
        %921 = vmatprep.subr.mxu0 0.0
        %922 = vmatpush1.msra.mxu0 0.0
        %923 = vmatprep.mubr.f32.mxu0 0.0
        %924 = vmatmul.mubr.f32.gmra.mrb[0].mxu0 %v857
        %v925 = vpop.f32.mrb[0].mxu0
        %v926 = vadd.f32 0.0, %v925
        %v927 = vpop.f32.mrb[0].mxu0
        %928 = vdwg.mxu0
        %929 = vrot.lane.b32.xlu0 %v759, 120
        %v930 = vpop.permute.xlu0 %929
        %931 = vrot.lane.b32.xlu0 %v760, 120
        %v932 = vpop.permute.xlu0 %931
        %933 = vrot.lane.b32.xlu0 %v761, 120
        %v934 = vpop.permute.xlu0 %933
        %v935 = vsel %vm764, %v930, 0
        %v937 = vsel %vm764, %v932, 0
        %v939 = vsel %vm764, %v934, 0
        %941 = vmatprep.subr.mxu0 0.0
        %942 = vmatpush1.xpose.msra.mxu0 %v937
        %943 = vmatprep.subr.mxu0 0.0
        %944 = vmatpush1.xpose.msra.mxu0 %v939
        %945 = vmatprep.subr.mxu0 0.0
        %946 = vmatpush1.xpose.msra.mxu0 0.0
        %947 = vmatprep.subr.mxu0 0.0
        %948 = vmatpush1.xpose.msra.mxu0 0.0
        %949 = vmatprep.subr.mxu0 0.0
        %950 = vmatpush1.xpose.msra.mxu0 0.0
        %951 = vmatprep.subr.mxu0 0.0
        %952 = vmatpush1.xpose.msra.mxu0 0.0
        %953 = vmatprep.subr.mxu0 0.0
        %954 = vmatpush1.xpose.msra.mxu0 0.0
        %955 = vmatprep.subr.mxu0 0.0
        %956 = vmatpush1.xpose.msra.mxu0 0.0
        %957 = vmatprep.subr.mxu0 0.0
        %958 = vmatpush1.xpose.msra.mxu0 0.0
        %959 = vmatprep.subr.mxu0 0.0
        %960 = vmatpush1.xpose.msra.mxu0 0.0
        %961 = vmatprep.subr.mxu0 0.0
        %962 = vmatpush1.xpose.msra.mxu0 0.0
        %963 = vmatprep.subr.mxu0 0.0
        %964 = vmatpush1.xpose.msra.mxu0 0.0
        %965 = vmatprep.subr.mxu0 0.0
        %966 = vmatpush1.xpose.msra.mxu0 0.0
        %967 = vmatprep.subr.mxu0 0.0
        %968 = vmatpush1.xpose.msra.mxu0 0.0
        %969 = vmatprep.subr.mxu0 0.0
        %970 = vmatpush1.xpose.msra.mxu0 0.0
        %971 = vmatprep.subr.mxu0 0.0
        %972 = vmatpush1.xpose.msra.mxu0 0.0
        %973 = vmatprep.subr.mxu0 0.0
        %974 = vmatpush1.xpose.msra.mxu0 0.0
        %975 = vmatprep.subr.mxu0 0.0
        %976 = vmatpush1.xpose.msra.mxu0 0.0
        %977 = vmatprep.subr.mxu0 0.0
        %978 = vmatpush1.xpose.msra.mxu0 0.0
        %979 = vmatprep.subr.mxu0 0.0
        %980 = vmatpush1.xpose.msra.mxu0 0.0
        %981 = vmatprep.subr.mxu0 0.0
        %982 = vmatpush1.xpose.msra.mxu0 0.0
        %983 = vmatprep.subr.mxu0 0.0
        %984 = vmatpush1.xpose.msra.mxu0 0.0
        %985 = vmatprep.subr.mxu0 0.0
        %986 = vmatpush1.xpose.msra.mxu0 0.0
        %987 = vmatprep.subr.mxu0 0.0
        %988 = vmatpush1.xpose.msra.mxu0 0.0
        %989 = vmatprep.subr.mxu0 0.0
        %990 = vmatpush1.xpose.msra.mxu0 0.0
        %991 = vmatprep.subr.mxu0 0.0
        %992 = vmatpush1.xpose.msra.mxu0 0.0
        %993 = vmatprep.subr.mxu0 0.0
        %994 = vmatpush1.xpose.msra.mxu0 0.0
        %995 = vmatprep.subr.mxu0 0.0
        %996 = vmatpush1.xpose.msra.mxu0 0.0
        %997 = vmatprep.subr.mxu0 0.0
        %998 = vmatpush1.xpose.msra.mxu0 0.0
        %999 = vmatprep.subr.mxu0 0.0
        %1000 = vmatpush1.xpose.msra.mxu0 0.0
        %1001 = vmatprep.subr.mxu0 0.0
        %1002 = vmatpush1.xpose.msra.mxu0 0.0
        %1003 = vmatprep.subr.mxu0 0.0
        %1004 = vmatpush1.xpose.msra.mxu0 0.0
        %1005 = vmatprep.mubr.f32.mxu0 0.0
        %1006 = vmatmul.mubr.f32.gmra.mrb[0].mxu0 %v935
        %v1007 = vpop.f32.mrb[0].mxu0
        %v1008 = vadd.f32 0.0, %v1007
        %v1009 = vpop.f32.mrb[0].mxu0
        %1010 = vdwg.mxu0
        %v1011 = vsel %vm844, %v1008, -inf
        %1012 = vmax.xlane.f32.xlu0 %v1011
        %v1013 = vpop.xlane.xlu0 %1012
        %v1014 = vsub.f32 %v1008, %v1013
        %v1015 = vmul.f32 %v1014, 1.442695
        %v1016 = vpow.pop %v1015
        %v1017 = vsel %vm844, %v1016, 0.0
        %1018 = vadd.xlane.f32.xlu0 %v1017
        %v1019 = vpop.xlane.xlu0 %1018
        %v1020 = vrcp.pop %v1019
        %v1021 = vmul.f32 %v1016, %v1020
        %1024 = vrot.lane.b32.xlu0 %v762, 120
        %v1025 = vpop.permute.xlu0 %1024
        %1026 = vrot.lane.b32.xlu0 %v763, 120
        %v1027 = vpop.permute.xlu0 %1026
        %v1031 = vsel %vm844, %v1021, 0
        %1033 = vmatprep.subr.mxu0 0.0
        %1034 = vmatpush1.msra.mxu0 %v1025
        %1035 = vmatprep.subr.mxu0 0.0
        %1036 = vmatpush1.msra.mxu0 %v1027
        %1037 = vmatprep.subr.mxu0 0.0
        %1038 = vmatpush1.msra.mxu0 0.0
        %1039 = vmatprep.subr.mxu0 0.0
        %1040 = vmatpush1.msra.mxu0 0.0
        %1041 = vmatprep.subr.mxu0 0.0
        %1042 = vmatpush1.msra.mxu0 0.0
        %1043 = vmatprep.subr.mxu0 0.0
        %1044 = vmatpush1.msra.mxu0 0.0
        %1045 = vmatprep.subr.mxu0 0.0
        %1046 = vmatpush1.msra.mxu0 0.0
        %1047 = vmatprep.subr.mxu0 0.0
        %1048 = vmatpush1.msra.mxu0 0.0
        %1049 = vmatprep.subr.mxu0 0.0
        %1050 = vmatpush1.msra.mxu0 0.0
        %1051 = vmatprep.subr.mxu0 0.0
        %1052 = vmatpush1.msra.mxu0 0.0
        %1053 = vmatprep.subr.mxu0 0.0
        %1054 = vmatpush1.msra.mxu0 0.0
        %1055 = vmatprep.subr.mxu0 0.0
        %1056 = vmatpush1.msra.mxu0 0.0
        %1057 = vmatprep.subr.mxu0 0.0
        %1058 = vmatpush1.msra.mxu0 0.0
        %1059 = vmatprep.subr.mxu0 0.0
        %1060 = vmatpush1.msra.mxu0 0.0
        %1061 = vmatprep.subr.mxu0 0.0
        %1062 = vmatpush1.msra.mxu0 0.0
        %1063 = vmatprep.subr.mxu0 0.0
        %1064 = vmatpush1.msra.mxu0 0.0
        %1065 = vmatprep.subr.mxu0 0.0
        %1066 = vmatpush1.msra.mxu0 0.0
        %1067 = vmatprep.subr.mxu0 0.0
        %1068 = vmatpush1.msra.mxu0 0.0
        %1069 = vmatprep.subr.mxu0 0.0
        %1070 = vmatpush1.msra.mxu0 0.0
        %1071 = vmatprep.subr.mxu0 0.0
        %1072 = vmatpush1.msra.mxu0 0.0
        %1073 = vmatprep.subr.mxu0 0.0
        %1074 = vmatpush1.msra.mxu0 0.0
        %1075 = vmatprep.subr.mxu0 0.0
        %1076 = vmatpush1.msra.mxu0 0.0
        %1077 = vmatprep.subr.mxu0 0.0
        %1078 = vmatpush1.msra.mxu0 0.0
        %1079 = vmatprep.subr.mxu0 0.0
        %1080 = vmatpush1.msra.mxu0 0.0
        %1081 = vmatprep.subr.mxu0 0.0
        %1082 = vmatpush1.msra.mxu0 0.0
        %1083 = vmatprep.subr.mxu0 0.0
        %1084 = vmatpush1.msra.mxu0 0.0
        %1085 = vmatprep.subr.mxu0 0.0
        %1086 = vmatpush1.msra.mxu0 0.0
        %1087 = vmatprep.subr.mxu0 0.0
        %1088 = vmatpush1.msra.mxu0 0.0
        %1089 = vmatprep.subr.mxu0 0.0
        %1090 = vmatpush1.msra.mxu0 0.0
        %1091 = vmatprep.subr.mxu0 0.0
        %1092 = vmatpush1.msra.mxu0 0.0
        %1093 = vmatprep.subr.mxu0 0.0
        %1094 = vmatpush1.msra.mxu0 0.0
        %1095 = vmatprep.subr.mxu0 0.0
        %1096 = vmatpush1.msra.mxu0 0.0
        %1097 = vmatprep.mubr.f32.mxu0 0.0
        %1098 = vmatmul.mubr.f32.gmra.mrb[0].mxu0 %v1031
        %v1099 = vpop.f32.mrb[0].mxu0
        %v1100 = vadd.f32 0.0, %v1099
        %v1101 = vpop.f32.mrb[0].mxu0
        %1102 = vdwg.mxu0
        %1103 = vrot.lane.b32.xlu0 %v759, 112
        %v1104 = vpop.permute.xlu0 %1103
        %1105 = vrot.lane.b32.xlu0 %v760, 112
        %v1106 = vpop.permute.xlu0 %1105
        %1107 = vrot.lane.b32.xlu0 %v761, 112
        %v1108 = vpop.permute.xlu0 %1107
        %v1109 = vsel %vm764, %v1104, 0
        %v1111 = vsel %vm764, %v1106, 0
        %v1113 = vsel %vm764, %v1108, 0
        %1115 = vmatprep.subr.mxu0 0.0
        %1116 = vmatpush1.xpose.msra.mxu0 %v1111
        %1117 = vmatprep.subr.mxu0 0.0
        %1118 = vmatpush1.xpose.msra.mxu0 %v1113
        %1119 = vmatprep.subr.mxu0 0.0
        %1120 = vmatpush1.xpose.msra.mxu0 0.0
        %1121 = vmatprep.subr.mxu0 0.0
        %1122 = vmatpush1.xpose.msra.mxu0 0.0
        %1123 = vmatprep.subr.mxu0 0.0
        %1124 = vmatpush1.xpose.msra.mxu0 0.0
        %1125 = vmatprep.subr.mxu0 0.0
        %1126 = vmatpush1.xpose.msra.mxu0 0.0
        %1127 = vmatprep.subr.mxu0 0.0
        %1128 = vmatpush1.xpose.msra.mxu0 0.0
        %1129 = vmatprep.subr.mxu0 0.0
        %1130 = vmatpush1.xpose.msra.mxu0 0.0
        %1131 = vmatprep.subr.mxu0 0.0
        %1132 = vmatpush1.xpose.msra.mxu0 0.0
        %1133 = vmatprep.subr.mxu0 0.0
        %1134 = vmatpush1.xpose.msra.mxu0 0.0
        %1135 = vmatprep.subr.mxu0 0.0
        %1136 = vmatpush1.xpose.msra.mxu0 0.0
        %1137 = vmatprep.subr.mxu0 0.0
        %1138 = vmatpush1.xpose.msra.mxu0 0.0
        %1139 = vmatprep.subr.mxu0 0.0
        %1140 = vmatpush1.xpose.msra.mxu0 0.0
        %1141 = vmatprep.subr.mxu0 0.0
        %1142 = vmatpush1.xpose.msra.mxu0 0.0
        %1143 = vmatprep.subr.mxu0 0.0
        %1144 = vmatpush1.xpose.msra.mxu0 0.0
        %1145 = vmatprep.subr.mxu0 0.0
        %1146 = vmatpush1.xpose.msra.mxu0 0.0
        %1147 = vmatprep.subr.mxu0 0.0
        %1148 = vmatpush1.xpose.msra.mxu0 0.0
        %1149 = vmatprep.subr.mxu0 0.0
        %1150 = vmatpush1.xpose.msra.mxu0 0.0
        %1151 = vmatprep.subr.mxu0 0.0
        %1152 = vmatpush1.xpose.msra.mxu0 0.0
        %1153 = vmatprep.subr.mxu0 0.0
        %1154 = vmatpush1.xpose.msra.mxu0 0.0
        %1155 = vmatprep.subr.mxu0 0.0
        %1156 = vmatpush1.xpose.msra.mxu0 0.0
        %1157 = vmatprep.subr.mxu0 0.0
        %1158 = vmatpush1.xpose.msra.mxu0 0.0
        %1159 = vmatprep.subr.mxu0 0.0
        %1160 = vmatpush1.xpose.msra.mxu0 0.0
        %1161 = vmatprep.subr.mxu0 0.0
        %1162 = vmatpush1.xpose.msra.mxu0 0.0
        %1163 = vmatprep.subr.mxu0 0.0
        %1164 = vmatpush1.xpose.msra.mxu0 0.0
        %1165 = vmatprep.subr.mxu0 0.0
        %1166 = vmatpush1.xpose.msra.mxu0 0.0
        %1167 = vmatprep.subr.mxu0 0.0
        %1168 = vmatpush1.xpose.msra.mxu0 0.0
        %1169 = vmatprep.subr.mxu0 0.0
        %1170 = vmatpush1.xpose.msra.mxu0 0.0
        %1171 = vmatprep.subr.mxu0 0.0
        %1172 = vmatpush1.xpose.msra.mxu0 0.0
        %1173 = vmatprep.subr.mxu0 0.0
        %1174 = vmatpush1.xpose.msra.mxu0 0.0
        %1175 = vmatprep.subr.mxu0 0.0
        %1176 = vmatpush1.xpose.msra.mxu0 0.0
        %1177 = vmatprep.subr.mxu0 0.0
        %1178 = vmatpush1.xpose.msra.mxu0 0.0
        %1179 = vmatprep.mubr.f32.mxu0 0.0
        %1180 = vmatmul.mubr.f32.gmra.mrb[0].mxu0 %v1109
        %v1181 = vpop.f32.mrb[0].mxu0
        %v1182 = vadd.f32 0.0, %v1181
        %v1183 = vpop.f32.mrb[0].mxu0
        %1184 = vdwg.mxu0
        %v1185 = vsel %vm844, %v1182, -inf
        %1186 = vmax.xlane.f32.xlu0 %v1185
        %v1187 = vpop.xlane.xlu0 %1186
        %v1188 = vsub.f32 %v1182, %v1187
        %v1189 = vmul.f32 %v1188, 1.442695
        %v1190 = vpow.pop %v1189
        %v1191 = vsel %vm844, %v1190, 0.0
        %1192 = vadd.xlane.f32.xlu0 %v1191
        %v1193 = vpop.xlane.xlu0 %1192
        %v1194 = vrcp.pop %v1193
        %v1195 = vmul.f32 %v1190, %v1194
        %1196 = vrot.lane.b32.xlu0 %v762, 112
        %v1197 = vpop.permute.xlu0 %1196
        %1198 = vrot.lane.b32.xlu0 %v763, 112
        %v1199 = vpop.permute.xlu0 %1198
        %v1203 = vsel %vm844, %v1195, 0
        %1205 = vmatprep.subr.mxu0 0.0
        %1206 = vmatpush1.msra.mxu0 %v1197
        %1207 = vmatprep.subr.mxu0 0.0
        %1208 = vmatpush1.msra.mxu0 %v1199
        %1209 = vmatprep.subr.mxu0 0.0
        %1210 = vmatpush1.msra.mxu0 0.0
        %1211 = vmatprep.subr.mxu0 0.0
        %1212 = vmatpush1.msra.mxu0 0.0
        %1213 = vmatprep.subr.mxu0 0.0
        %1214 = vmatpush1.msra.mxu0 0.0
        %1215 = vmatprep.subr.mxu0 0.0
        %1216 = vmatpush1.msra.mxu0 0.0
        %1217 = vmatprep.subr.mxu0 0.0
        %1218 = vmatpush1.msra.mxu0 0.0
        %1219 = vmatprep.subr.mxu0 0.0
        %1220 = vmatpush1.msra.mxu0 0.0
        %1221 = vmatprep.subr.mxu0 0.0
        %1222 = vmatpush1.msra.mxu0 0.0
        %1223 = vmatprep.subr.mxu0 0.0
        %1224 = vmatpush1.msra.mxu0 0.0
        %1225 = vmatprep.subr.mxu0 0.0
        %1226 = vmatpush1.msra.mxu0 0.0
        %1227 = vmatprep.subr.mxu0 0.0
        %1228 = vmatpush1.msra.mxu0 0.0
        %1229 = vmatprep.subr.mxu0 0.0
        %1230 = vmatpush1.msra.mxu0 0.0
        %1231 = vmatprep.subr.mxu0 0.0
        %1232 = vmatpush1.msra.mxu0 0.0
        %1233 = vmatprep.subr.mxu0 0.0
        %1234 = vmatpush1.msra.mxu0 0.0
        %1235 = vmatprep.subr.mxu0 0.0
        %1236 = vmatpush1.msra.mxu0 0.0
        %1237 = vmatprep.subr.mxu0 0.0
        %1238 = vmatpush1.msra.mxu0 0.0
        %1239 = vmatprep.subr.mxu0 0.0
        %1240 = vmatpush1.msra.mxu0 0.0
        %1241 = vmatprep.subr.mxu0 0.0
        %1242 = vmatpush1.msra.mxu0 0.0
        %1243 = vmatprep.subr.mxu0 0.0
        %1244 = vmatpush1.msra.mxu0 0.0
        %1245 = vmatprep.subr.mxu0 0.0
        %1246 = vmatpush1.msra.mxu0 0.0
        %1247 = vmatprep.subr.mxu0 0.0
        %1248 = vmatpush1.msra.mxu0 0.0
        %1249 = vmatprep.subr.mxu0 0.0
        %1250 = vmatpush1.msra.mxu0 0.0
        %1251 = vmatprep.subr.mxu0 0.0
        %1252 = vmatpush1.msra.mxu0 0.0
        %1253 = vmatprep.subr.mxu0 0.0
        %1254 = vmatpush1.msra.mxu0 0.0
        %1255 = vmatprep.subr.mxu0 0.0
        %1256 = vmatpush1.msra.mxu0 0.0
        %1257 = vmatprep.subr.mxu0 0.0
        %1258 = vmatpush1.msra.mxu0 0.0
        %1259 = vmatprep.subr.mxu0 0.0
        %1260 = vmatpush1.msra.mxu0 0.0
        %1261 = vmatprep.subr.mxu0 0.0
        %1262 = vmatpush1.msra.mxu0 0.0
        %1263 = vmatprep.subr.mxu0 0.0
        %1264 = vmatpush1.msra.mxu0 0.0
        %1265 = vmatprep.subr.mxu0 0.0
        %1266 = vmatpush1.msra.mxu0 0.0
        %1267 = vmatprep.subr.mxu0 0.0
        %1268 = vmatpush1.msra.mxu0 0.0
        %1269 = vmatprep.mubr.f32.mxu0 0.0
        %1270 = vmatmul.mubr.f32.gmra.mrb[0].mxu0 %v1203
        %v1271 = vpop.f32.mrb[0].mxu0
        %v1272 = vadd.f32 0.0, %v1271
        %v1273 = vpop.f32.mrb[0].mxu0
        %1274 = vdwg.mxu0
        %1275 = vrot.lane.b32.xlu0 %v759, 104
        %v1276 = vpop.permute.xlu0 %1275
        %1277 = vrot.lane.b32.xlu0 %v760, 104
        %v1278 = vpop.permute.xlu0 %1277
        %1279 = vrot.lane.b32.xlu0 %v761, 104
        %v1280 = vpop.permute.xlu0 %1279
        %v1281 = vsel %vm764, %v1276, 0
        %v1283 = vsel %vm764, %v1278, 0
        %v1285 = vsel %vm764, %v1280, 0
        %1287 = vmatprep.subr.mxu0 0.0
        %1288 = vmatpush1.xpose.msra.mxu0 %v1283
        %1289 = vmatprep.subr.mxu0 0.0
        %1290 = vmatpush1.xpose.msra.mxu0 %v1285
        %1291 = vmatprep.subr.mxu0 0.0
        %1292 = vmatpush1.xpose.msra.mxu0 0.0
        %1293 = vmatprep.subr.mxu0 0.0
        %1294 = vmatpush1.xpose.msra.mxu0 0.0
        %1295 = vmatprep.subr.mxu0 0.0
        %1296 = vmatpush1.xpose.msra.mxu0 0.0
        %1297 = vmatprep.subr.mxu0 0.0
        %1298 = vmatpush1.xpose.msra.mxu0 0.0
        %1299 = vmatprep.subr.mxu0 0.0
        %1300 = vmatpush1.xpose.msra.mxu0 0.0
        %1301 = vmatprep.subr.mxu0 0.0
        %1302 = vmatpush1.xpose.msra.mxu0 0.0
        %1303 = vmatprep.subr.mxu0 0.0
        %1304 = vmatpush1.xpose.msra.mxu0 0.0
        %1305 = vmatprep.subr.mxu0 0.0
        %1306 = vmatpush1.xpose.msra.mxu0 0.0
        %1307 = vmatprep.subr.mxu0 0.0
        %1308 = vmatpush1.xpose.msra.mxu0 0.0
        %1309 = vmatprep.subr.mxu0 0.0
        %1310 = vmatpush1.xpose.msra.mxu0 0.0
        %1311 = vmatprep.subr.mxu0 0.0
        %1312 = vmatpush1.xpose.msra.mxu0 0.0
        %1313 = vmatprep.subr.mxu0 0.0
        %1314 = vmatpush1.xpose.msra.mxu0 0.0
        %1315 = vmatprep.subr.mxu0 0.0
        %1316 = vmatpush1.xpose.msra.mxu0 0.0
        %1317 = vmatprep.subr.mxu0 0.0
        %1318 = vmatpush1.xpose.msra.mxu0 0.0
        %1319 = vmatprep.subr.mxu0 0.0
        %1320 = vmatpush1.xpose.msra.mxu0 0.0
        %1321 = vmatprep.subr.mxu0 0.0
        %1322 = vmatpush1.xpose.msra.mxu0 0.0
        %1323 = vmatprep.subr.mxu0 0.0
        %1324 = vmatpush1.xpose.msra.mxu0 0.0
        %1325 = vmatprep.subr.mxu0 0.0
        %1326 = vmatpush1.xpose.msra.mxu0 0.0
        %1327 = vmatprep.subr.mxu0 0.0
        %1328 = vmatpush1.xpose.msra.mxu0 0.0
        %1329 = vmatprep.subr.mxu0 0.0
        %1330 = vmatpush1.xpose.msra.mxu0 0.0
        %1331 = vmatprep.subr.mxu0 0.0
        %1332 = vmatpush1.xpose.msra.mxu0 0.0
        %1333 = vmatprep.subr.mxu0 0.0
        %1334 = vmatpush1.xpose.msra.mxu0 0.0
        %1335 = vmatprep.subr.mxu0 0.0
        %1336 = vmatpush1.xpose.msra.mxu0 0.0
        %1337 = vmatprep.subr.mxu0 0.0
        %1338 = vmatpush1.xpose.msra.mxu0 0.0
        %1339 = vmatprep.subr.mxu0 0.0
        %1340 = vmatpush1.xpose.msra.mxu0 0.0
        %1341 = vmatprep.subr.mxu0 0.0
        %1342 = vmatpush1.xpose.msra.mxu0 0.0
        %1343 = vmatprep.subr.mxu0 0.0
        %1344 = vmatpush1.xpose.msra.mxu0 0.0
        %1345 = vmatprep.subr.mxu0 0.0
        %1346 = vmatpush1.xpose.msra.mxu0 0.0
        %1347 = vmatprep.subr.mxu0 0.0
        %1348 = vmatpush1.xpose.msra.mxu0 0.0
        %1349 = vmatprep.subr.mxu0 0.0
        %1350 = vmatpush1.xpose.msra.mxu0 0.0
        %1351 = vmatprep.mubr.f32.mxu0 0.0
        %1352 = vmatmul.mubr.f32.gmra.mrb[0].mxu0 %v1281
        %v1353 = vpop.f32.mrb[0].mxu0
        %v1354 = vadd.f32 0.0, %v1353
        %v1355 = vpop.f32.mrb[0].mxu0
        %1356 = vdwg.mxu0
        %v1357 = vsel %vm844, %v1354, -inf
        %1358 = vmax.xlane.f32.xlu0 %v1357
        %v1359 = vpop.xlane.xlu0 %1358
        %v1360 = vsub.f32 %v1354, %v1359
        %v1361 = vmul.f32 %v1360, 1.442695
        %v1362 = vpow.pop %v1361
        %v1363 = vsel %vm844, %v1362, 0.0
        %1364 = vadd.xlane.f32.xlu0 %v1363
        %v1365 = vpop.xlane.xlu0 %1364
        %v1366 = vrcp.pop %v1365
        %v1367 = vmul.f32 %v1362, %v1366
        %1368 = vrot.lane.b32.xlu0 %v762, 104
        %v1369 = vpop.permute.xlu0 %1368
        %1370 = vrot.lane.b32.xlu0 %v763, 104
        %v1371 = vpop.permute.xlu0 %1370
        %v1375 = vsel %vm844, %v1367, 0
        %1377 = vmatprep.subr.mxu0 0.0
        %1378 = vmatpush1.msra.mxu0 %v1369
        %1379 = vmatprep.subr.mxu0 0.0
        %1380 = vmatpush1.msra.mxu0 %v1371
        %1381 = vmatprep.subr.mxu0 0.0
        %1382 = vmatpush1.msra.mxu0 0.0
        %1383 = vmatprep.subr.mxu0 0.0
        %1384 = vmatpush1.msra.mxu0 0.0
        %1385 = vmatprep.subr.mxu0 0.0
        %1386 = vmatpush1.msra.mxu0 0.0
        %1387 = vmatprep.subr.mxu0 0.0
        %1388 = vmatpush1.msra.mxu0 0.0
        %1389 = vmatprep.subr.mxu0 0.0
        %1390 = vmatpush1.msra.mxu0 0.0
        %1391 = vmatprep.subr.mxu0 0.0
        %1392 = vmatpush1.msra.mxu0 0.0
        %1393 = vmatprep.subr.mxu0 0.0
        %1394 = vmatpush1.msra.mxu0 0.0
        %1395 = vmatprep.subr.mxu0 0.0
        %1396 = vmatpush1.msra.mxu0 0.0
        %1397 = vmatprep.subr.mxu0 0.0
        %1398 = vmatpush1.msra.mxu0 0.0
        %1399 = vmatprep.subr.mxu0 0.0
        %1400 = vmatpush1.msra.mxu0 0.0
        %1401 = vmatprep.subr.mxu0 0.0
        %1402 = vmatpush1.msra.mxu0 0.0
        %1403 = vmatprep.subr.mxu0 0.0
        %1404 = vmatpush1.msra.mxu0 0.0
        %1405 = vmatprep.subr.mxu0 0.0
        %1406 = vmatpush1.msra.mxu0 0.0
        %1407 = vmatprep.subr.mxu0 0.0
        %1408 = vmatpush1.msra.mxu0 0.0
        %1409 = vmatprep.subr.mxu0 0.0
        %1410 = vmatpush1.msra.mxu0 0.0
        %1411 = vmatprep.subr.mxu0 0.0
        %1412 = vmatpush1.msra.mxu0 0.0
        %1413 = vmatprep.subr.mxu0 0.0
        %1414 = vmatpush1.msra.mxu0 0.0
        %1415 = vmatprep.subr.mxu0 0.0
        %1416 = vmatpush1.msra.mxu0 0.0
        %1417 = vmatprep.subr.mxu0 0.0
        %1418 = vmatpush1.msra.mxu0 0.0
        %1419 = vmatprep.subr.mxu0 0.0
        %1420 = vmatpush1.msra.mxu0 0.0
        %1421 = vmatprep.subr.mxu0 0.0
        %1422 = vmatpush1.msra.mxu0 0.0
        %1423 = vmatprep.subr.mxu0 0.0
        %1424 = vmatpush1.msra.mxu0 0.0
        %1425 = vmatprep.subr.mxu0 0.0
        %1426 = vmatpush1.msra.mxu0 0.0
        %1427 = vmatprep.subr.mxu0 0.0
        %1428 = vmatpush1.msra.mxu0 0.0
        %1429 = vmatprep.subr.mxu0 0.0
        %1430 = vmatpush1.msra.mxu0 0.0
        %1431 = vmatprep.subr.mxu0 0.0
        %1432 = vmatpush1.msra.mxu0 0.0
        %1433 = vmatprep.subr.mxu0 0.0
        %1434 = vmatpush1.msra.mxu0 0.0
        %1435 = vmatprep.subr.mxu0 0.0
        %1436 = vmatpush1.msra.mxu0 0.0
        %1437 = vmatprep.subr.mxu0 0.0
        %1438 = vmatpush1.msra.mxu0 0.0
        %1439 = vmatprep.subr.mxu0 0.0
        %1440 = vmatpush1.msra.mxu0 0.0
        %1441 = vmatprep.mubr.f32.mxu0 0.0
        %1442 = vmatmul.mubr.f32.gmra.mrb[0].mxu0 %v1375
        %v1443 = vpop.f32.mrb[0].mxu0
        %v1444 = vadd.f32 0.0, %v1443
        %v1445 = vpop.f32.mrb[0].mxu0
        %1446 = vdwg.mxu0
        %1448 = vrot.lane.b32.xlu0 %v1100, 8
        %v1449 = vpop.permute.xlu0 %1448
        %1452 = vrot.lane.b32.xlu0 %v1272, 16
        %v1453 = vpop.permute.xlu0 %1452
        %1456 = vrot.lane.b32.xlu0 %v1444, 24
        %v1457 = vpop.permute.xlu0 %1456
        %v1459 = vsel %vm764, %v926, %v1449
        %v1460 = vsel %vm844, %v1459, %v1453
        %vm1461 = vcmask 195584
        %v1462 = vsel %vm1461, %v1460, %v1457
        %v1463 = vld [vmem:[%s9] sm:$0xff]
        %v1464 = vld [vmem:[%s9 + $0x8] sm:$0xff]
        %v1465 = vld [vmem:[%s9 + $0x10] sm:$0xff]
        %v1466 = vld [vmem:[%s9 + $0x18] sm:$0xff]
        %v1467 = vld [vmem:[%s9 + $0x20] sm:$0xff]
        %v1468 = vld [vmem:[%s9 + $0x28] sm:$0xff]
        %v1469 = vld [vmem:[%s10] sm:$0x1]
        %v1471 = vlaneseq
        %v1472 = vshrl.u32 %v1471, 7
        %v1473 = vsub.s32 0, %v1472
        %v1474 = vrot.slane %v1469, %v1473
        %v1477 = vsel %vm673, %v1462, 0
        %v1480 = vsel %vm673, %v1463, 0
        %v1483 = vsel %vm673, %v1464, 0
        %v1486 = vsel %vm673, %v1465, 0
        %v1489 = vsel %vm673, %v1466, 0
        %v1492 = vsel %vm673, %v1467, 0
        %v1495 = vsel %vm673, %v1468, 0
        %1497 = vmatprep.subr.mxu0 0.0
        %1498 = vmatpush1.xpose.msra.mxu0 %v1480
        %1499 = vmatprep.subr.mxu0 0.0
        %1500 = vmatpush1.xpose.msra.mxu0 %v1483
        %1501 = vmatprep.subr.mxu0 0.0
        %1502 = vmatpush1.xpose.msra.mxu0 %v1486
        %1503 = vmatprep.subr.mxu0 0.0
        %1504 = vmatpush1.xpose.msra.mxu0 %v1489
        %1505 = vmatprep.subr.mxu0 0.0
        %1506 = vmatpush1.xpose.msra.mxu0 %v1492
        %1507 = vmatprep.subr.mxu0 0.0
        %1508 = vmatpush1.xpose.msra.mxu0 %v1495
        %1509 = vmatprep.subr.mxu0 0.0
        %1510 = vmatpush1.xpose.msra.mxu0 0.0
        %1511 = vmatprep.subr.mxu0 0.0
        %1512 = vmatpush1.xpose.msra.mxu0 0.0
        %1513 = vmatprep.subr.mxu0 0.0
        %1514 = vmatpush1.xpose.msra.mxu0 0.0
        %1515 = vmatprep.subr.mxu0 0.0
        %1516 = vmatpush1.xpose.msra.mxu0 0.0
        %1517 = vmatprep.subr.mxu0 0.0
        %1518 = vmatpush1.xpose.msra.mxu0 0.0
        %1519 = vmatprep.subr.mxu0 0.0
        %1520 = vmatpush1.xpose.msra.mxu0 0.0
        %1521 = vmatprep.subr.mxu0 0.0
        %1522 = vmatpush1.xpose.msra.mxu0 0.0
        %1523 = vmatprep.subr.mxu0 0.0
        %1524 = vmatpush1.xpose.msra.mxu0 0.0
        %1525 = vmatprep.subr.mxu0 0.0
        %1526 = vmatpush1.xpose.msra.mxu0 0.0
        %1527 = vmatprep.subr.mxu0 0.0
        %1528 = vmatpush1.xpose.msra.mxu0 0.0
        %1529 = vmatprep.subr.mxu0 0.0
        %1530 = vmatpush1.xpose.msra.mxu0 0.0
        %1531 = vmatprep.subr.mxu0 0.0
        %1532 = vmatpush1.xpose.msra.mxu0 0.0
        %1533 = vmatprep.subr.mxu0 0.0
        %1534 = vmatpush1.xpose.msra.mxu0 0.0
        %1535 = vmatprep.subr.mxu0 0.0
        %1536 = vmatpush1.xpose.msra.mxu0 0.0
        %1537 = vmatprep.subr.mxu0 0.0
        %1538 = vmatpush1.xpose.msra.mxu0 0.0
        %1539 = vmatprep.subr.mxu0 0.0
        %1540 = vmatpush1.xpose.msra.mxu0 0.0
        %1541 = vmatprep.subr.mxu0 0.0
        %1542 = vmatpush1.xpose.msra.mxu0 0.0
        %1543 = vmatprep.subr.mxu0 0.0
        %1544 = vmatpush1.xpose.msra.mxu0 0.0
        %1545 = vmatprep.subr.mxu0 0.0
        %1546 = vmatpush1.xpose.msra.mxu0 0.0
        %1547 = vmatprep.subr.mxu0 0.0
        %1548 = vmatpush1.xpose.msra.mxu0 0.0
        %1549 = vmatprep.subr.mxu0 0.0
        %1550 = vmatpush1.xpose.msra.mxu0 0.0
        %1551 = vmatprep.subr.mxu0 0.0
        %1552 = vmatpush1.xpose.msra.mxu0 0.0
        %1553 = vmatprep.subr.mxu0 0.0
        %1554 = vmatpush1.xpose.msra.mxu0 0.0
        %1555 = vmatprep.subr.mxu0 0.0
        %1556 = vmatpush1.xpose.msra.mxu0 0.0
        %1557 = vmatprep.subr.mxu0 0.0
        %1558 = vmatpush1.xpose.msra.mxu0 0.0
        %1559 = vmatprep.subr.mxu0 0.0
        %1560 = vmatpush1.xpose.msra.mxu0 0.0
        %1561 = vmatprep.mubr.f32.mxu0 0.0
        %1562 = vmatmul.mubr.f32.gmra.mrb[0].mxu0 %v1477
        %v1563 = vpop.f32.mrb[0].mxu0
        %v1564 = vadd.f32 %v1474, %v1563
        %v1565 = vpop.f32.mrb[0].mxu0
        %1566 = vdwg.mxu0
        %vm1567 = vcmask 392192
        %1568 = vst.msk [vmem:[%s434] sm:$0xff] %vm1567, %v1564
        %s1569 = sand.u32 %s272, 1
        %s1570 = scalar_lea.sflag [#allocation6], %s1569
        %s1571 = sand.u32 %s272, 1
        %s1572 = smul.addr %s1571, 8
        %s1573 = scalar_lea.vmem [#allocation12], %s1572
        // Predicated region
        $region85: #{tpu_custom_call.1} parent=63 // pred_check
          %p1574 = pneg %p282
        $region86: #{tpu_custom_call.1} parent=63 // pred_check_branch
          %1576 = sbr.rel (%p1574) target = $region88
        $region87: #{tpu_custom_call.1} parent=63 // pred_region
          %s1578 = ssub.s32 128, 128
          %1579 = vsyncadd %s1570, %s1578
          %s1580 = smul.addr %s28, 128
          %s1581 = scalar_lea.hbm %s11, %s1580
          %s1583 = sshll.u32 %s1573, 4
          %s1584 = int_to_ptr.vmem [resolvable:$true] %s1583
          %1586 = dma.vmem_to_hbm [thread:$0]  %s1584, 128, %s1581, %s1570
        $region88: #{tpu_custom_call.1} parent=63 // pred_fallthru
          _
      $region64: #{tpu_custom_call.1} parent=5 // pred_fallthru
        _
      %p1587 = scmp.le.s32.totalorder 2, %s23
      // Predicated region
      $region89: #{tpu_custom_call.1} parent=5 // pred_check
        %p1588 = pneg %p1587
      $region90: #{tpu_custom_call.1} parent=5 // pred_check_branch
        %1590 = sbr.rel (%p1588) target = $region92
      $region91: #{tpu_custom_call.1} parent=5 // pred_region
        %s1591 = ssub.s32 %s23, 2
        // Predicated region
        $region93: #{tpu_custom_call.1} parent=91 // pred_check
          %p1592 = pneg %p288
        $region94: #{tpu_custom_call.1} parent=91 // pred_check_branch
          %1594 = sbr.rel (%p1592) target = $region96
        $region95: #{tpu_custom_call.1} parent=91 // pred_region
          %s1595 = sand.u32 %s273, 1
          %s1596 = scalar_lea.sflag [#allocation6], %s1595
          %s1597 = sand.u32 %s273, 1
          %s1598 = smul.addr %s1597, 8
          %s1599 = scalar_lea.vmem [#allocation12], %s1598
          %1600 = dma.done %s1596, 128
        $region96: #{tpu_custom_call.1} parent=91 // pred_fallthru
          _
      $region92: #{tpu_custom_call.1} parent=5 // pred_fallthru
        _
    $region6: #{tpu_custom_call.1} parent=1 // loop_footer
      %s27 = sadd.s32 1, %s23
    $region7: #{tpu_custom_call.1} parent=1 // loop_footer_branch
      %22 = sbr.rel target = $region3
    $region8: #{tpu_custom_call.1} parent=1 // loop_exit
      _
    %1601 = vsyncpa [#allocation5], 1
    %s1602 = scalar_lea.sflag [#allocation5], 1
    %1603 = vsyncpa %s1602, 1
    %1604 = vsyncpa [#allocation8], 1
    %1605 = vsyncpa [#allocation11], 1
    %1606 = vsyncpa [#allocation6], 1
    %s1607 = scalar_lea.sflag [#allocation6], 1
    %1608 = vsyncpa %s1607, 1

</llo_original>
